<compile_context>
chip_gen: v7x
topology: tpu7x:2x2x1
jax: 0.10.0
libtpu: 0.0.40
codegen_flags: <defaults>
</compile_context>

<pallas_src>
import functools

import jax
import jax.numpy as jnp
from jax.experimental import pallas as pl
from jax.experimental.pallas import tpu as pltpu


# ----------------------------- Pallas kernels ------------------------------

def _layernorm(x, g, b):
    # fp32 LayerNorm (stats in fp32 on every TPU generation).
    mu = jnp.mean(x, axis=-1, keepdims=True)
    xc = x - mu
    var = jnp.mean(xc * xc, axis=-1, keepdims=True)
    return xc * jax.lax.rsqrt(var + 1e-5) * g + b


def _patch_embed_kernel(x_ref, w_ref, b_ref, o_ref):
    # stride==kernel Conv2d as a matmul: [NP, C*P*P] @ [C*P*P, D] + b
    x = x_ref[0].astype(jnp.bfloat16)
    o_ref[0] = (jnp.dot(x, w_ref[...], preferred_element_type=jnp.float32)
                + b_ref[...])


def _pre_ln_kernel(x_ref, g_ref, b_ref, o_ref):
    o_ref[0] = _layernorm(x_ref[0], g_ref[...], b_ref[...])


def _ln_qkv_kernel(h_ref, g_ref, b_ref, wqkv_ref, bqkv_ref, o_ref):
    # Fused: LN1(h) @ W_qkv + b_qkv  -> bf16 QKV activations.
    xln = _layernorm(h_ref[0], g_ref[...], b_ref[...])
    qkv = (jnp.dot(xln.astype(jnp.bfloat16), wqkv_ref[...],
                   preferred_element_type=jnp.float32) + bqkv_ref[...])
    o_ref[0] = qkv.astype(jnp.bfloat16)


def _attn_out_res_kernel(qkv_ref, wo_ref, bo_ref, h_ref, o_ref, *, nh, hd, scale):
    # Fused: multi-head attention (all heads of one batch element) + output
    # projection + residual add.  Output stays packed [S, D] (lane-dense).
    qkv = qkv_ref[0]                     # [S, 3D] bf16
    wo = wo_ref[...]                     # [D, D]  bf16
    d = nh * hd
    acc = h_ref[0] + bo_ref[...]         # residual + out-proj bias (fp32)
    for head in range(nh):               # static unroll, nh is small
        lo, hi = head * hd, (head + 1) * hd
        q = qkv[:, lo:hi]
        k = qkv[:, d + lo:d + hi]
        v = qkv[:, 2 * d + lo:2 * d + hi]
        # scores: contract on head_dim (q @ k^T on the MXU, no host transpose)
        s = jnp.einsum("qd,kd->qk", q, k,
                       preferred_element_type=jnp.float32) * scale
        m = jnp.max(s, axis=-1, keepdims=True)
        p = jnp.exp(s - m)                                   # fp32 softmax
        p = p * pl.reciprocal(jnp.sum(p, axis=-1, keepdims=True), approx=True)
        oh = jnp.dot(p.astype(jnp.bfloat16), v,
                     preferred_element_type=jnp.float32)     # [S, hd]
        # concat(heads) @ Wo  ==  sum over heads of  oh @ Wo[head rows, :]
        acc = acc + jnp.dot(oh.astype(jnp.bfloat16), wo[lo:hi, :],
                            preferred_element_type=jnp.float32)
    o_ref[0] = acc


def _ln_mlp_res_kernel(h_ref, g_ref, b_ref, w1_ref, b1_ref, w2_ref, b2_ref, o_ref):
    # Fused: LN2 + fc1 + quickGELU + fc2 + residual add.
    x = h_ref[0]
    xln = _layernorm(x, g_ref[...], b_ref[...])
    y = (jnp.dot(xln.astype(jnp.bfloat16), w1_ref[...],
                 preferred_element_type=jnp.float32) + b1_ref[...])
    y = y * jax.nn.sigmoid(1.702 * y)                        # quick_gelu, fp32
    y2 = (jnp.dot(y.astype(jnp.bfloat16), w2_ref[...],
                  preferred_element_type=jnp.float32) + b2_ref[...])
    o_ref[0] = x + y2


def _pooler_head_kernel(x_ref, g_ref, bln_ref, w_ref, b_ref, o_ref):
    # pooler_output = post_LN(CLS); logits = pooled @ W_head(+pad) + b_head
    pooled = _layernorm(x_ref[...], g_ref[...], bln_ref[...])
    o_ref[...] = (jnp.dot(pooled.astype(jnp.bfloat16), w_ref[...],
                          preferred_element_type=jnp.float32) + b_ref[...])


# ------------------------------ wrappers -----------------------------------

_PAR = pltpu.CompilerParams(dimension_semantics=("parallel",))


def _rep(shape):
    # replicated block (weights / biases): same block every grid step
    return pl.BlockSpec(tuple(shape), lambda b: (0,) * len(shape))


def _per_batch(shape):
    # one batch element per grid step; block = full trailing dims
    return pl.BlockSpec((1,) + tuple(shape[1:]),
                        lambda b: (b,) + (0,) * (len(shape) - 1))


def pallas_patch_embed(patches, w, b):
    B, NP, CPP = patches.shape
    D = w.shape[1]
    return pl.pallas_call(
        _patch_embed_kernel,
        out_shape=jax.ShapeDtypeStruct((B, NP, D), jnp.float32),
        grid=(B,),
        in_specs=[_per_batch(patches.shape), _rep(w.shape), _rep(b.shape)],
        out_specs=_per_batch((B, NP, D)),
        compiler_params=_PAR,
    )(patches, w, b)


def pallas_pre_ln(h, g, b):
    return pl.pallas_call(
        _pre_ln_kernel,
        out_shape=jax.ShapeDtypeStruct(h.shape, jnp.float32),
        grid=(h.shape[0],),
        in_specs=[_per_batch(h.shape), _rep(g.shape), _rep(b.shape)],
        out_specs=_per_batch(h.shape),
        compiler_params=_PAR,
    )(h, g, b)


def pallas_ln_qkv(h, g, b, wqkv, bqkv):
    B, S, D = h.shape
    return pl.pallas_call(
        _ln_qkv_kernel,
        out_shape=jax.ShapeDtypeStruct((B, S, 3 * D), jnp.bfloat16),
        grid=(B,),
        in_specs=[_per_batch(h.shape), _rep(g.shape), _rep(b.shape),
                  _rep(wqkv.shape), _rep(bqkv.shape)],
        out_specs=_per_batch((B, S, 3 * D)),
        compiler_params=_PAR,
    )(h, g, b, wqkv, bqkv)


def pallas_attn_out_res(qkv, wo, bo, h, *, nh, hd, scale):
    B, S, D = h.shape
    kern = functools.partial(_attn_out_res_kernel, nh=nh, hd=hd, scale=scale)
    return pl.pallas_call(
        kern,
        out_shape=jax.ShapeDtypeStruct((B, S, D), jnp.float32),
        grid=(B,),
        in_specs=[_per_batch(qkv.shape), _rep(wo.shape), _rep(bo.shape),
                  _per_batch(h.shape)],
        out_specs=_per_batch(h.shape),
        compiler_params=_PAR,
    )(qkv, wo, bo, h)


def pallas_ln_mlp_res(h, g, b, w1, b1, w2, b2):
    return pl.pallas_call(
        _ln_mlp_res_kernel,
        out_shape=jax.ShapeDtypeStruct(h.shape, jnp.float32),
        grid=(h.shape[0],),
        in_specs=[_per_batch(h.shape), _rep(g.shape), _rep(b.shape),
                  _rep(w1.shape), _rep(b1.shape), _rep(w2.shape), _rep(b2.shape)],
        out_specs=_per_batch(h.shape),
        compiler_params=_PAR,
    )(h, g, b, w1, b1, w2, b2)


def pallas_pooler_head(cls_tok, g, b, w_pad, b_pad):
    Bsz, D = cls_tok.shape
    NCp = w_pad.shape[1]
    return pl.pallas_call(
        _pooler_head_kernel,
        out_shape=jax.ShapeDtypeStruct((Bsz, NCp), jnp.float32),
        grid=(1,),
        in_specs=[_rep(cls_tok.shape), _rep(g.shape), _rep(b.shape),
                  _rep(w_pad.shape), _rep(b_pad.shape)],
        out_specs=_rep((Bsz, NCp)),
    )(cls_tok, g, b, w_pad, b_pad)


# --------------------------- model definition ------------------------------

def init_params(key, cfg):
    C, P, D, M = cfg["channels"], cfg["patch"], cfg["hidden"], cfg["mlp"]
    S = (cfg["image"] // P) ** 2 + 1
    NC = cfg["num_classes"]
    NC_PAD = 128          # lane-dense class-head output; sliced back in glue
    n_layer = cfg["layers"]

    keys = iter(jax.random.split(key, 8 + 8 * n_layer))

    def nrm(shape, dtype=jnp.float32):
        return (0.02 * jax.random.normal(next(keys), shape)).astype(dtype)

    ones = lambda shape: jnp.ones(shape, jnp.float32)
    zeros = lambda shape: jnp.zeros(shape, jnp.float32)

    # Weights stored as [in, out] (torch Linear weight transposed); matmul
    # weights in bf16 (fp32 accumulation inside kernels), biases/LN in fp32.
    head_w = nrm((cfg["projection_dim"], NC))
    head_w_pad = (jnp.zeros((cfg["projection_dim"], NC_PAD), jnp.float32)
                  .at[:, :NC].set(head_w).astype(jnp.bfloat16))
    head_b_pad = jnp.zeros((1, NC_PAD), jnp.float32)

    params = dict(
        patch_w=nrm((C * P * P, D), jnp.bfloat16), patch_b=zeros((1, D)),
        class_emb=nrm((D,)),
        pos_emb=nrm((S, D)),
        pre_ln_g=ones((1, D)), pre_ln_b=zeros((1, D)),
        post_ln_g=ones((1, D)), post_ln_b=zeros((1, D)),
        head_w_pad=head_w_pad, head_b_pad=head_b_pad,
        layers=[],
    )
    for _ in range(n_layer):
        wqkv = jnp.concatenate([nrm((D, D)), nrm((D, D)), nrm((D, D))], axis=1)
        params["layers"].append(dict(
            ln1_g=ones((1, D)), ln1_b=zeros((1, D)),
            wqkv=wqkv.astype(jnp.bfloat16), bqkv=zeros((1, 3 * D)),
            wo=nrm((D, D), jnp.bfloat16), bo=zeros((1, D)),
            ln2_g=ones((1, D)), ln2_b=zeros((1, D)),
            w1=nrm((D, M), jnp.bfloat16), b1=zeros((1, M)),
            w2=nrm((M, D), jnp.bfloat16), b2=zeros((1, D)),
        ))
    return params


def clip_vision_classifier_forward(params, x_nchw, cfg):
    B, C, H, W = x_nchw.shape
    P = cfg["patch"]
    hp, wp = H // P, W // P
    NP = hp * wp
    D = cfg["hidden"]
    nh = cfg["heads"]
    hd = D // nh
    scale = 1.0 / (hd ** 0.5)

    # patch extraction (one-time layout glue): NCHW -> [B, NP, C*P*P],
    # channel-major so the stride==kernel Conv2d becomes a single matmul.
    patches = x_nchw.reshape(B, C, hp, P, wp, P)
    patches = patches.transpose(0, 2, 4, 1, 3, 5).reshape(B, NP, C * P * P)
    patch_emb = pallas_patch_embed(patches, params["patch_w"], params["patch_b"])

    # class token + position embeddings (tiny, once per forward)
    cls = jnp.broadcast_to(params["class_emb"][None, None, :], (B, 1, D))
    h = jnp.concatenate([cls, patch_emb], axis=1) + params["pos_emb"][None]

    # CLIP pre-layernorm
    h = pallas_pre_ln(h, params["pre_ln_g"], params["pre_ln_b"])

    # pre-norm transformer encoder: 3 fused kernels per layer
    for lp in params["layers"]:
        qkv = pallas_ln_qkv(h, lp["ln1_g"], lp["ln1_b"], lp["wqkv"], lp["bqkv"])
        h = pallas_attn_out_res(qkv, lp["wo"], lp["bo"], h,
                                nh=nh, hd=hd, scale=scale)
        h = pallas_ln_mlp_res(h, lp["ln2_g"], lp["ln2_b"],
                              lp["w1"], lp["b1"], lp["w2"], lp["b2"])

    # pooler_output = post_LN(CLS); logits = class_head(pooled)  (fused)
    # TODO(synk): like the torch module, no visual_projection is applied, so the
    # head requires projection_dim == hidden_size (true for this config).
    cls_tok = h[:, 0, :]
    logits_pad = pallas_pooler_head(cls_tok, params["post_ln_g"],
                                    params["post_ln_b"],
                                    params["head_w_pad"], params["head_b_pad"])
    return logits_pad[:, :cfg["num_classes"]]


# --------------------------------- main -------------------------------------

if __name__ == "__main__":
    cfg = dict(channels=3, image=16, patch=8, hidden=32, heads=2, mlp=64,
               layers=2, projection_dim=32, num_classes=10)

    key = jax.random.PRNGKey(0)
    pkey, xkey = jax.random.split(key)
    params = init_params(pkey, cfg)

    # NCHW input, as in PyTorch.
    x = jax.random.normal(
        xkey, (2, cfg["channels"], cfg["image"], cfg["image"]), dtype=jnp.float32)

    fwd = jax.jit(functools.partial(clip_vision_classifier_forward, cfg=cfg))
    logits = fwd(params, x)
    jax.block_until_ready(logits)

    assert logits.shape == (2, cfg["num_classes"])
    assert logits.dtype == jnp.float32
    print("KERNEL_OK")
</pallas_src>

<mosaic_0001>
module attributes {stable_mosaic.version = 11 : i64} {
  func.func @_pre_ln_kernel(%arg0: i32, %arg1: memref<1x5x32xf32, #tpu.memory_space<vmem>>, %arg2: memref<1x32xf32, #tpu.memory_space<vmem>>, %arg3: memref<1x32xf32, #tpu.memory_space<vmem>>, %arg4: memref<1x5x32xf32, #tpu.memory_space<vmem>>) attributes {dimension_semantics = [#tpu.dimension_semantics<parallel>], iteration_bounds = array<i64: 2>, scalar_prefetch = 0 : i64, scratch_operands = 0 : i64, tpu.core_type = #tpu.core_type<tc>, window_params = [{transform_indices = @transform_0, window_bounds = array<i64: 1, 5, 32>}, {pipeline_mode = #tpu.pipeline_mode<synchronous>, transform_indices = @transform_1, window_bounds = array<i64: 1, 32>}, {pipeline_mode = #tpu.pipeline_mode<synchronous>, transform_indices = @transform_2, window_bounds = array<i64: 1, 32>}, {transform_indices = @transform_3, window_bounds = array<i64: 1, 5, 32>}]} {
    %c0 = arith.constant 0 : index
    %c0_0 = arith.constant 0 : index
    %c0_1 = arith.constant 0 : index
    %0 = vector.load %arg1[%c0, %c0_0, %c0_1] : memref<1x5x32xf32, #tpu.memory_space<vmem>>, vector<1x5x32xf32>
    %1 = vector.shape_cast %0 : vector<1x5x32xf32> to vector<5x32xf32>
    %c0_2 = arith.constant 0 : index
    %c0_3 = arith.constant 0 : index
    %2 = vector.load %arg2[%c0_2, %c0_3] : memref<1x32xf32, #tpu.memory_space<vmem>>, vector<1x32xf32>
    %c0_4 = arith.constant 0 : index
    %c0_5 = arith.constant 0 : index
    %3 = vector.load %arg3[%c0_4, %c0_5] : memref<1x32xf32, #tpu.memory_space<vmem>>, vector<1x32xf32>
    %cst = arith.constant dense<0.000000e+00> : vector<5xf32>
    %4 = vector.multi_reduction <add>, %1, %cst [1] : vector<5x32xf32> to vector<5xf32>
    %5 = vector.shape_cast %4 : vector<5xf32> to vector<5x1xf32>
    %cst_6 = arith.constant 3.200000e+01 : f32
    %6 = vector.broadcast %cst_6 : f32 to vector<5x1xf32>
    %7 = arith.divf %5, %6 : vector<5x1xf32>
    %8 = vector.broadcast %7 : vector<5x1xf32> to vector<5x32xf32>
    %9 = arith.subf %1, %8 : vector<5x32xf32>
    %10 = arith.mulf %9, %9 : vector<5x32xf32>
    %cst_7 = arith.constant dense<0.000000e+00> : vector<5xf32>
    %11 = vector.multi_reduction <add>, %10, %cst_7 [1] : vector<5x32xf32> to vector<5xf32>
    %12 = vector.shape_cast %11 : vector<5xf32> to vector<5x1xf32>
    %cst_8 = arith.constant 3.200000e+01 : f32
    %13 = vector.broadcast %cst_8 : f32 to vector<5x1xf32>
    %14 = arith.divf %12, %13 : vector<5x1xf32>
    %cst_9 = arith.constant 9.99999974E-6 : f32
    %15 = vector.broadcast %cst_9 : f32 to vector<5x1xf32>
    %16 = arith.addf %14, %15 : vector<5x1xf32>
    %17 = math.rsqrt %16 : vector<5x1xf32>
    %18 = vector.broadcast %17 : vector<5x1xf32> to vector<5x32xf32>
    %19 = arith.mulf %9, %18 : vector<5x32xf32>
    %20 = vector.broadcast %2 : vector<1x32xf32> to vector<5x32xf32>
    %21 = arith.mulf %19, %20 : vector<5x32xf32>
    %22 = vector.broadcast %3 : vector<1x32xf32> to vector<5x32xf32>
    %23 = arith.addf %21, %22 : vector<5x32xf32>
    %c0_10 = arith.constant 0 : index
    %c0_11 = arith.constant 0 : index
    %c0_12 = arith.constant 0 : index
    %24 = vector.load %arg4[%c0_10, %c0_11, %c0_12] : memref<1x5x32xf32, #tpu.memory_space<vmem>>, vector<1x5x32xf32>
    %25 = vector.shape_cast %24 : vector<1x5x32xf32> to vector<5x32xf32>
    %26 = vector.shape_cast %23 : vector<5x32xf32> to vector<1x5x32xf32>
    tpu.vector_store %arg4[%c0_10, %c0_11, %c0_12], %26 {strides = array<i32>} : memref<1x5x32xf32, #tpu.memory_space<vmem>>, vector<1x5x32xf32>,
    return
  }
  func.func @transform_0(%arg0: i32) -> (i32, i32, i32) {
    %c0_i32 = arith.constant 0 : i32
    %c0_i32_0 = arith.constant 0 : i32
    %c0_i32_1 = arith.constant 0 : i32
    return %arg0, %c0_i32, %c0_i32_0 : i32, i32, i32
  }
  func.func @transform_1(%arg0: i32) -> (i32, i32) {
    %c0_i32 = arith.constant 0 : i32
    %c0_i32_0 = arith.constant 0 : i32
    %c0_i32_1 = arith.constant 0 : i32
    return %c0_i32, %c0_i32_0 : i32, i32
  }
  func.func @transform_2(%arg0: i32) -> (i32, i32) {
    %c0_i32 = arith.constant 0 : i32
    %c0_i32_0 = arith.constant 0 : i32
    %c0_i32_1 = arith.constant 0 : i32
    return %c0_i32, %c0_i32_0 : i32, i32
  }
  func.func @transform_3(%arg0: i32) -> (i32, i32, i32) {
    %c0_i32 = arith.constant 0 : i32
    %c0_i32_0 = arith.constant 0 : i32
    %c0_i32_1 = arith.constant 0 : i32
    return %arg0, %c0_i32, %c0_i32_0 : i32, i32, i32
  }
}

module attributes {stable_mosaic.version = 11 : i64} {
  func.func @_ln_qkv_kernel(%arg0: i32, %arg1: memref<1x5x32xf32, #tpu.memory_space<vmem>>, %arg2: memref<1x32xf32, #tpu.memory_space<vmem>>, %arg3: memref<1x32xf32, #tpu.memory_space<vmem>>, %arg4: memref<32x96xbf16, #tpu.memory_space<vmem>>, %arg5: memref<1x96xf32, #tpu.memory_space<vmem>>, %arg6: memref<1x5x96xbf16, #tpu.memory_space<vmem>>) attributes {dimension_semantics = [#tpu.dimension_semantics<parallel>], iteration_bounds = array<i64: 2>, scalar_prefetch = 0 : i64, scratch_operands = 0 : i64, tpu.core_type = #tpu.core_type<tc>, window_params = [{transform_indices = @transform_0, window_bounds = array<i64: 1, 5, 32>}, {pipeline_mode = #tpu.pipeline_mode<synchronous>, transform_indices = @transform_1, window_bounds = array<i64: 1, 32>}, {pipeline_mode = #tpu.pipeline_mode<synchronous>, transform_indices = @transform_2, window_bounds = array<i64: 1, 32>}, {pipeline_mode = #tpu.pipeline_mode<synchronous>, transform_indices = @transform_3, window_bounds = array<i64: 32, 96>}, {pipeline_mode = #tpu.pipeline_mode<synchronous>, transform_indices = @transform_4, window_bounds = array<i64: 1, 96>}, {transform_indices = @transform_5, window_bounds = array<i64: 1, 5, 96>}]} {
    %c0 = arith.constant 0 : index
    %c0_0 = arith.constant 0 : index
    %c0_1 = arith.constant 0 : index
    %0 = vector.load %arg1[%c0, %c0_0, %c0_1] : memref<1x5x32xf32, #tpu.memory_space<vmem>>, vector<1x5x32xf32>
    %1 = vector.shape_cast %0 : vector<1x5x32xf32> to vector<5x32xf32>
    %c0_2 = arith.constant 0 : index
    %c0_3 = arith.constant 0 : index
    %2 = vector.load %arg2[%c0_2, %c0_3] : memref<1x32xf32, #tpu.memory_space<vmem>>, vector<1x32xf32>
    %c0_4 = arith.constant 0 : index
    %c0_5 = arith.constant 0 : index
    %3 = vector.load %arg3[%c0_4, %c0_5] : memref<1x32xf32, #tpu.memory_space<vmem>>, vector<1x32xf32>
    %cst = arith.constant dense<0.000000e+00> : vector<5xf32>
    %4 = vector.multi_reduction <add>, %1, %cst [1] : vector<5x32xf32> to vector<5xf32>
    %5 = vector.shape_cast %4 : vector<5xf32> to vector<5x1xf32>
    %cst_6 = arith.constant 3.200000e+01 : f32
    %6 = vector.broadcast %cst_6 : f32 to vector<5x1xf32>
    %7 = arith.divf %5, %6 : vector<5x1xf32>
    %8 = vector.broadcast %7 : vector<5x1xf32> to vector<5x32xf32>
    %9 = arith.subf %1, %8 : vector<5x32xf32>
    %10 = arith.mulf %9, %9 : vector<5x32xf32>
    %cst_7 = arith.constant dense<0.000000e+00> : vector<5xf32>
    %11 = vector.multi_reduction <add>, %10, %cst_7 [1] : vector<5x32xf32> to vector<5xf32>
    %12 = vector.shape_cast %11 : vector<5xf32> to vector<5x1xf32>
    %cst_8 = arith.constant 3.200000e+01 : f32
    %13 = vector.broadcast %cst_8 : f32 to vector<5x1xf32>
    %14 = arith.divf %12, %13 : vector<5x1xf32>
    %cst_9 = arith.constant 9.99999974E-6 : f32
    %15 = vector.broadcast %cst_9 : f32 to vector<5x1xf32>
    %16 = arith.addf %14, %15 : vector<5x1xf32>
    %17 = math.rsqrt %16 : vector<5x1xf32>
    %18 = vector.broadcast %17 : vector<5x1xf32> to vector<5x32xf32>
    %19 = arith.mulf %9, %18 : vector<5x32xf32>
    %20 = vector.broadcast %2 : vector<1x32xf32> to vector<5x32xf32>
    %21 = arith.mulf %19, %20 : vector<5x32xf32>
    %22 = vector.broadcast %3 : vector<1x32xf32> to vector<5x32xf32>
    %23 = arith.addf %21, %22 : vector<5x32xf32>
    %24 = arith.truncf %23 : vector<5x32xf32> to vector<5x32xbf16>
    %c0_10 = arith.constant 0 : index
    %c0_11 = arith.constant 0 : index
    %25 = vector.load %arg4[%c0_10, %c0_11] : memref<32x96xbf16, #tpu.memory_space<vmem>>, vector<32x96xbf16>
    %cst_12 = arith.constant dense<0.000000e+00> : vector<5x96xf32>
    %26 = tpu.matmul %24, %25, %cst_12 {dimension_numbers = #tpu.dot_dimension_numbers<[1], [0], [0], [1], [0, 0, 1, 1], [], []>} : vector<5x32xbf16>, vector<32x96xbf16>, vector<5x96xf32> -> vector<5x96xf32>
    %c0_13 = arith.constant 0 : index
    %c0_14 = arith.constant 0 : index
    %27 = vector.load %arg5[%c0_13, %c0_14] : memref<1x96xf32, #tpu.memory_space<vmem>>, vector<1x96xf32>
    %28 = vector.broadcast %27 : vector<1x96xf32> to vector<5x96xf32>
    %29 = arith.addf %26, %28 : vector<5x96xf32>
    %30 = arith.truncf %29 : vector<5x96xf32> to vector<5x96xbf16>
    %c0_15 = arith.constant 0 : index
    %c0_16 = arith.constant 0 : index
    %c0_17 = arith.constant 0 : index
    %31 = vector.load %arg6[%c0_15, %c0_16, %c0_17] : memref<1x5x96xbf16, #tpu.memory_space<vmem>>, vector<1x5x96xbf16>
    %32 = vector.shape_cast %31 : vector<1x5x96xbf16> to vector<5x96xbf16>
    %33 = vector.shape_cast %30 : vector<5x96xbf16> to vector<1x5x96xbf16>
    tpu.vector_store %arg6[%c0_15, %c0_16, %c0_17], %33 {strides = array<i32>} : memref<1x5x96xbf16, #tpu.memory_space<vmem>>, vector<1x5x96xbf16>,
    return
  }
  func.func @transform_0(%arg0: i32) -> (i32, i32, i32) {
    %c0_i32 = arith.constant 0 : i32
    %c0_i32_0 = arith.constant 0 : i32
    %c0_i32_1 = arith.constant 0 : i32
    return %arg0, %c0_i32, %c0_i32_0 : i32, i32, i32
  }
  func.func @transform_1(%arg0: i32) -> (i32, i32) {
    %c0_i32 = arith.constant 0 : i32
    %c0_i32_0 = arith.constant 0 : i32
    %c0_i32_1 = arith.constant 0 : i32
    return %c0_i32, %c0_i32_0 : i32, i32
  }
  func.func @transform_2(%arg0: i32) -> (i32, i32) {
    %c0_i32 = arith.constant 0 : i32
    %c0_i32_0 = arith.constant 0 : i32
    %c0_i32_1 = arith.constant 0 : i32
    return %c0_i32, %c0_i32_0 : i32, i32
  }
  func.func @transform_3(%arg0: i32) -> (i32, i32) {
    %c0_i32 = arith.constant 0 : i32
    %c0_i32_0 = arith.constant 0 : i32
    %c0_i32_1 = arith.constant 0 : i32
    return %c0_i32, %c0_i32_0 : i32, i32
  }
  func.func @transform_4(%arg0: i32) -> (i32, i32) {
    %c0_i32 = arith.constant 0 : i32
    %c0_i32_0 = arith.constant 0 : i32
    %c0_i32_1 = arith.constant 0 : i32
    return %c0_i32, %c0_i32_0 : i32, i32
  }
  func.func @transform_5(%arg0: i32) -> (i32, i32, i32) {
    %c0_i32 = arith.constant 0 : i32
    %c0_i32_0 = arith.constant 0 : i32
    %c0_i32_1 = arith.constant 0 : i32
    return %arg0, %c0_i32, %c0_i32_0 : i32, i32, i32
  }
}

module attributes {stable_mosaic.version = 11 : i64} {
  func.func @_patch_embed_kernel(%arg0: i32, %arg1: memref<1x4x192xf32, #tpu.memory_space<vmem>>, %arg2: memref<192x32xbf16, #tpu.memory_space<vmem>>, %arg3: memref<1x32xf32, #tpu.memory_space<vmem>>, %arg4: memref<1x4x32xf32, #tpu.memory_space<vmem>>) attributes {dimension_semantics = [#tpu.dimension_semantics<parallel>], iteration_bounds = array<i64: 2>, scalar_prefetch = 0 : i64, scratch_operands = 0 : i64, tpu.core_type = #tpu.core_type<tc>, window_params = [{transform_indices = @transform_0, window_bounds = array<i64: 1, 4, 192>}, {pipeline_mode = #tpu.pipeline_mode<synchronous>, transform_indices = @transform_1, window_bounds = array<i64: 192, 32>}, {pipeline_mode = #tpu.pipeline_mode<synchronous>, transform_indices = @transform_2, window_bounds = array<i64: 1, 32>}, {transform_indices = @transform_3, window_bounds = array<i64: 1, 4, 32>}]} {
    %c0 = arith.constant 0 : index
    %c0_0 = arith.constant 0 : index
    %c0_1 = arith.constant 0 : index
    %0 = vector.load %arg1[%c0, %c0_0, %c0_1] : memref<1x4x192xf32, #tpu.memory_space<vmem>>, vector<1x4x192xf32>
    %1 = vector.shape_cast %0 : vector<1x4x192xf32> to vector<4x192xf32>
    %2 = arith.truncf %1 : vector<4x192xf32> to vector<4x192xbf16>
    %c0_2 = arith.constant 0 : index
    %c0_3 = arith.constant 0 : index
    %3 = vector.load %arg2[%c0_2, %c0_3] : memref<192x32xbf16, #tpu.memory_space<vmem>>, vector<192x32xbf16>
    %cst = arith.constant dense<0.000000e+00> : vector<4x32xf32>
    %4 = tpu.matmul %2, %3, %cst {dimension_numbers = #tpu.dot_dimension_numbers<[1], [0], [0], [1], [0, 0, 1, 1], [], []>} : vector<4x192xbf16>, vector<192x32xbf16>, vector<4x32xf32> -> vector<4x32xf32>
    %c0_4 = arith.constant 0 : index
    %c0_5 = arith.constant 0 : index
    %5 = vector.load %arg3[%c0_4, %c0_5] : memref<1x32xf32, #tpu.memory_space<vmem>>, vector<1x32xf32>
    %6 = vector.broadcast %5 : vector<1x32xf32> to vector<4x32xf32>
    %7 = arith.addf %4, %6 : vector<4x32xf32>
    %c0_6 = arith.constant 0 : index
    %c0_7 = arith.constant 0 : index
    %c0_8 = arith.constant 0 : index
    %8 = vector.load %arg4[%c0_6, %c0_7, %c0_8] : memref<1x4x32xf32, #tpu.memory_space<vmem>>, vector<1x4x32xf32>
    %9 = vector.shape_cast %8 : vector<1x4x32xf32> to vector<4x32xf32>
    %10 = vector.shape_cast %7 : vector<4x32xf32> to vector<1x4x32xf32>
    tpu.vector_store %arg4[%c0_6, %c0_7, %c0_8], %10 {strides = array<i32>} : memref<1x4x32xf32, #tpu.memory_space<vmem>>, vector<1x4x32xf32>,
    return
  }
  func.func @transform_0(%arg0: i32) -> (i32, i32, i32) {
    %c0_i32 = arith.constant 0 : i32
    %c0_i32_0 = arith.constant 0 : i32
    %c0_i32_1 = arith.constant 0 : i32
    return %arg0, %c0_i32, %c0_i32_0 : i32, i32, i32
  }
  func.func @transform_1(%arg0: i32) -> (i32, i32) {
    %c0_i32 = arith.constant 0 : i32
    %c0_i32_0 = arith.constant 0 : i32
    %c0_i32_1 = arith.constant 0 : i32
    return %c0_i32, %c0_i32_0 : i32, i32
  }
  func.func @transform_2(%arg0: i32) -> (i32, i32) {
    %c0_i32 = arith.constant 0 : i32
    %c0_i32_0 = arith.constant 0 : i32
    %c0_i32_1 = arith.constant 0 : i32
    return %c0_i32, %c0_i32_0 : i32, i32
  }
  func.func @transform_3(%arg0: i32) -> (i32, i32, i32) {
    %c0_i32 = arith.constant 0 : i32
    %c0_i32_0 = arith.constant 0 : i32
    %c0_i32_1 = arith.constant 0 : i32
    return %arg0, %c0_i32, %c0_i32_0 : i32, i32, i32
  }
}

module attributes {stable_mosaic.version = 11 : i64} {
  func.func @_attn_out_res_kernel(%arg0: i32, %arg1: memref<1x5x96xbf16, #tpu.memory_space<vmem>>, %arg2: memref<32x32xbf16, #tpu.memory_space<vmem>>, %arg3: memref<1x32xf32, #tpu.memory_space<vmem>>, %arg4: memref<1x5x32xf32, #tpu.memory_space<vmem>>, %arg5: memref<1x5x32xf32, #tpu.memory_space<vmem>>) attributes {dimension_semantics = [#tpu.dimension_semantics<parallel>], iteration_bounds = array<i64: 2>, scalar_prefetch = 0 : i64, scratch_operands = 0 : i64, tpu.core_type = #tpu.core_type<tc>, window_params = [{transform_indices = @transform_0, window_bounds = array<i64: 1, 5, 96>}, {pipeline_mode = #tpu.pipeline_mode<synchronous>, transform_indices = @transform_1, window_bounds = array<i64: 32, 32>}, {pipeline_mode = #tpu.pipeline_mode<synchronous>, transform_indices = @transform_2, window_bounds = array<i64: 1, 32>}, {transform_indices = @transform_3, window_bounds = array<i64: 1, 5, 32>}, {transform_indices = @transform_4, window_bounds = array<i64: 1, 5, 32>}]} {
    %c0 = arith.constant 0 : index
    %c0_0 = arith.constant 0 : index
    %c0_1 = arith.constant 0 : index
    %0 = vector.load %arg1[%c0, %c0_0, %c0_1] : memref<1x5x96xbf16, #tpu.memory_space<vmem>>, vector<1x5x96xbf16>
    %1 = vector.shape_cast %0 : vector<1x5x96xbf16> to vector<5x96xbf16>
    %c0_2 = arith.constant 0 : index
    %c0_3 = arith.constant 0 : index
    %2 = vector.load %arg2[%c0_2, %c0_3] : memref<32x32xbf16, #tpu.memory_space<vmem>>, vector<32x32xbf16>
    %c0_4 = arith.constant 0 : index
    %c0_5 = arith.constant 0 : index
    %c0_6 = arith.constant 0 : index
    %3 = vector.load %arg4[%c0_4, %c0_5, %c0_6] : memref<1x5x32xf32, #tpu.memory_space<vmem>>, vector<1x5x32xf32>
    %4 = vector.shape_cast %3 : vector<1x5x32xf32> to vector<5x32xf32>
    %c0_7 = arith.constant 0 : index
    %c0_8 = arith.constant 0 : index
    %5 = vector.load %arg3[%c0_7, %c0_8] : memref<1x32xf32, #tpu.memory_space<vmem>>, vector<1x32xf32>
    %6 = vector.broadcast %5 : vector<1x32xf32> to vector<5x32xf32>
    %7 = arith.addf %4, %6 : vector<5x32xf32>
    %8 = vector.extract_strided_slice %1 {offsets = [0, 0], sizes = [5, 16], strides = [1, 1]} : vector<5x96xbf16> to vector<5x16xbf16>
    %9 = vector.extract_strided_slice %1 {offsets = [0, 32], sizes = [5, 16], strides = [1, 1]} : vector<5x96xbf16> to vector<5x16xbf16>
    %10 = vector.extract_strided_slice %1 {offsets = [0, 64], sizes = [5, 16], strides = [1, 1]} : vector<5x96xbf16> to vector<5x16xbf16>
    "tpu.trace_start"() <{level = 10 : i32, message = "qd,kd->qk"}> : () -> ()
    %cst = arith.constant dense<0.000000e+00> : vector<5x5xf32>
    %11 = tpu.matmul %8, %9, %cst {dimension_numbers = #tpu.dot_dimension_numbers<[1], [1], [0], [0], [0, 0, 1, 0], [], []>} : vector<5x16xbf16>, vector<5x16xbf16>, vector<5x5xf32> -> vector<5x5xf32>
    "tpu.trace_stop"() : () -> ()
    %cst_9 = arith.constant 2.500000e-01 : f32
    %12 = vector.broadcast %cst_9 : f32 to vector<5x5xf32>
    %13 = arith.mulf %11, %12 : vector<5x5xf32>
    %cst_10 = arith.constant dense<0xFF800000> : vector<5xf32>
    %14 = vector.multi_reduction <maximumf>, %13, %cst_10 [1] : vector<5x5xf32> to vector<5xf32>
    %15 = vector.shape_cast %14 : vector<5xf32> to vector<5x1xf32>
    %16 = vector.broadcast %15 : vector<5x1xf32> to vector<5x5xf32>
    %17 = arith.subf %13, %16 : vector<5x5xf32>
    %18 = math.exp %17 : vector<5x5xf32>
    %cst_11 = arith.constant dense<0.000000e+00> : vector<5xf32>
    %19 = vector.multi_reduction <add>, %18, %cst_11 [1] : vector<5x5xf32> to vector<5xf32>
    %20 = vector.shape_cast %19 : vector<5xf32> to vector<5x1xf32>
    %21 = tpu.reciprocal %20 {approx = true} : vector<5x1xf32> -> vector<5x1xf32>
    %22 = vector.broadcast %21 : vector<5x1xf32> to vector<5x5xf32>
    %23 = arith.mulf %18, %22 : vector<5x5xf32>
    %24 = arith.truncf %23 : vector<5x5xf32> to vector<5x5xbf16>
    %cst_12 = arith.constant dense<0.000000e+00> : vector<5x16xf32>
    %25 = tpu.matmul %24, %10, %cst_12 {dimension_numbers = #tpu.dot_dimension_numbers<[1], [0], [0], [1], [0, 0, 1, 1], [], []>} : vector<5x5xbf16>, vector<5x16xbf16>, vector<5x16xf32> -> vector<5x16xf32>
    %26 = arith.truncf %25 : vector<5x16xf32> to vector<5x16xbf16>
    %27 = vector.extract_strided_slice %2 {offsets = [0, 0], sizes = [16, 32], strides = [1, 1]} : vector<32x32xbf16> to vector<16x32xbf16>
    %cst_13 = arith.constant dense<0.000000e+00> : vector<5x32xf32>
    %28 = tpu.matmul %26, %27, %cst_13 {dimension_numbers = #tpu.dot_dimension_numbers<[1], [0], [0], [1], [0, 0, 1, 1], [], []>} : vector<5x16xbf16>, vector<16x32xbf16>, vector<5x32xf32> -> vector<5x32xf32>
    %29 = arith.addf %7, %28 : vector<5x32xf32>
    %30 = vector.extract_strided_slice %1 {offsets = [0, 16], sizes = [5, 16], strides = [1, 1]} : vector<5x96xbf16> to vector<5x16xbf16>
    %31 = vector.extract_strided_slice %1 {offsets = [0, 48], sizes = [5, 16], strides = [1, 1]} : vector<5x96xbf16> to vector<5x16xbf16>
    %32 = vector.extract_strided_slice %1 {offsets = [0, 80], sizes = [5, 16], strides = [1, 1]} : vector<5x96xbf16> to vector<5x16xbf16>
    "tpu.trace_start"() <{level = 10 : i32, message = "qd,kd->qk"}> : () -> ()
    %cst_14 = arith.constant dense<0.000000e+00> : vector<5x5xf32>
    %33 = tpu.matmul %30, %31, %cst_14 {dimension_numbers = #tpu.dot_dimension_numbers<[1], [1], [0], [0], [0, 0, 1, 0], [], []>} : vector<5x16xbf16>, vector<5x16xbf16>, vector<5x5xf32> -> vector<5x5xf32>
    "tpu.trace_stop"() : () -> ()
    %cst_15 = arith.constant 2.500000e-01 : f32
    %34 = vector.broadcast %cst_15 : f32 to vector<5x5xf32>
    %35 = arith.mulf %33, %34 : vector<5x5xf32>
    %cst_16 = arith.constant dense<0xFF800000> : vector<5xf32>
    %36 = vector.multi_reduction <maximumf>, %35, %cst_16 [1] : vector<5x5xf32> to vector<5xf32>
    %37 = vector.shape_cast %36 : vector<5xf32> to vector<5x1xf32>
    %38 = vector.broadcast %37 : vector<5x1xf32> to vector<5x5xf32>
    %39 = arith.subf %35, %38 : vector<5x5xf32>
    %40 = math.exp %39 : vector<5x5xf32>
    %cst_17 = arith.constant dense<0.000000e+00> : vector<5xf32>
    %41 = vector.multi_reduction <add>, %40, %cst_17 [1] : vector<5x5xf32> to vector<5xf32>
    %42 = vector.shape_cast %41 : vector<5xf32> to vector<5x1xf32>
    %43 = tpu.reciprocal %42 {approx = true} : vector<5x1xf32> -> vector<5x1xf32>
    %44 = vector.broadcast %43 : vector<5x1xf32> to vector<5x5xf32>
    %45 = arith.mulf %40, %44 : vector<5x5xf32>
    %46 = arith.truncf %45 : vector<5x5xf32> to vector<5x5xbf16>
    %cst_18 = arith.constant dense<0.000000e+00> : vector<5x16xf32>
    %47 = tpu.matmul %46, %32, %cst_18 {dimension_numbers = #tpu.dot_dimension_numbers<[1], [0], [0], [1], [0, 0, 1, 1], [], []>} : vector<5x5xbf16>, vector<5x16xbf16>, vector<5x16xf32> -> vector<5x16xf32>
    %48 = arith.truncf %47 : vector<5x16xf32> to vector<5x16xbf16>
    %49 = vector.extract_strided_slice %2 {offsets = [16, 0], sizes = [16, 32], strides = [1, 1]} : vector<32x32xbf16> to vector<16x32xbf16>
    %cst_19 = arith.constant dense<0.000000e+00> : vector<5x32xf32>
    %50 = tpu.matmul %48, %49, %cst_19 {dimension_numbers = #tpu.dot_dimension_numbers<[1], [0], [0], [1], [0, 0, 1, 1], [], []>} : vector<5x16xbf16>, vector<16x32xbf16>, vector<5x32xf32> -> vector<5x32xf32>
    %51 = arith.addf %29, %50 : vector<5x32xf32>
    %c0_20 = arith.constant 0 : index
    %c0_21 = arith.constant 0 : index
    %c0_22 = arith.constant 0 : index
    %52 = vector.load %arg5[%c0_20, %c0_21, %c0_22] : memref<1x5x32xf32, #tpu.memory_space<vmem>>, vector<1x5x32xf32>
    %53 = vector.shape_cast %52 : vector<1x5x32xf32> to vector<5x32xf32>
    %54 = vector.shape_cast %51 : vector<5x32xf32> to vector<1x5x32xf32>
    tpu.vector_store %arg5[%c0_20, %c0_21, %c0_22], %54 {strides = array<i32>} : memref<1x5x32xf32, #tpu.memory_space<vmem>>, vector<1x5x32xf32>,
    return
  }
  func.func @transform_0(%arg0: i32) -> (i32, i32, i32) {
    %c0_i32 = arith.constant 0 : i32
    %c0_i32_0 = arith.constant 0 : i32
    %c0_i32_1 = arith.constant 0 : i32
    return %arg0, %c0_i32, %c0_i32_0 : i32, i32, i32
  }
  func.func @transform_1(%arg0: i32) -> (i32, i32) {
    %c0_i32 = arith.constant 0 : i32
    %c0_i32_0 = arith.constant 0 : i32
    %c0_i32_1 = arith.constant 0 : i32
    return %c0_i32, %c0_i32_0 : i32, i32
  }
  func.func @transform_2(%arg0: i32) -> (i32, i32) {
    %c0_i32 = arith.constant 0 : i32
    %c0_i32_0 = arith.constant 0 : i32
    %c0_i32_1 = arith.constant 0 : i32
    return %c0_i32, %c0_i32_0 : i32, i32
  }
  func.func @transform_3(%arg0: i32) -> (i32, i32, i32) {
    %c0_i32 = arith.constant 0 : i32
    %c0_i32_0 = arith.constant 0 : i32
    %c0_i32_1 = arith.constant 0 : i32
    return %arg0, %c0_i32, %c0_i32_0 : i32, i32, i32
  }
  func.func @transform_4(%arg0: i32) -> (i32, i32, i32) {
    %c0_i32 = arith.constant 0 : i32
    %c0_i32_0 = arith.constant 0 : i32
    %c0_i32_1 = arith.constant 0 : i32
    return %arg0, %c0_i32, %c0_i32_0 : i32, i32, i32
  }
}

module attributes {stable_mosaic.version = 11 : i64} {
  func.func @_ln_mlp_res_kernel(%arg0: i32, %arg1: memref<1x5x32xf32, #tpu.memory_space<vmem>>, %arg2: memref<1x32xf32, #tpu.memory_space<vmem>>, %arg3: memref<1x32xf32, #tpu.memory_space<vmem>>, %arg4: memref<32x64xbf16, #tpu.memory_space<vmem>>, %arg5: memref<1x64xf32, #tpu.memory_space<vmem>>, %arg6: memref<64x32xbf16, #tpu.memory_space<vmem>>, %arg7: memref<1x32xf32, #tpu.memory_space<vmem>>, %arg8: memref<1x5x32xf32, #tpu.memory_space<vmem>>) attributes {dimension_semantics = [#tpu.dimension_semantics<parallel>], iteration_bounds = array<i64: 2>, scalar_prefetch = 0 : i64, scratch_operands = 0 : i64, tpu.core_type = #tpu.core_type<tc>, window_params = [{transform_indices = @transform_0, window_bounds = array<i64: 1, 5, 32>}, {pipeline_mode = #tpu.pipeline_mode<synchronous>, transform_indices = @transform_1, window_bounds = array<i64: 1, 32>}, {pipeline_mode = #tpu.pipeline_mode<synchronous>, transform_indices = @transform_2, window_bounds = array<i64: 1, 32>}, {pipeline_mode = #tpu.pipeline_mode<synchronous>, transform_indices = @transform_3, window_bounds = array<i64: 32, 64>}, {pipeline_mode = #tpu.pipeline_mode<synchronous>, transform_indices = @transform_4, window_bounds = array<i64: 1, 64>}, {pipeline_mode = #tpu.pipeline_mode<synchronous>, transform_indices = @transform_5, window_bounds = array<i64: 64, 32>}, {pipeline_mode = #tpu.pipeline_mode<synchronous>, transform_indices = @transform_6, window_bounds = array<i64: 1, 32>}, {transform_indices = @transform_7, window_bounds = array<i64: 1, 5, 32>}]} {
    %c0 = arith.constant 0 : index
    %c0_0 = arith.constant 0 : index
    %c0_1 = arith.constant 0 : index
    %0 = vector.load %arg1[%c0, %c0_0, %c0_1] : memref<1x5x32xf32, #tpu.memory_space<vmem>>, vector<1x5x32xf32>
    %1 = vector.shape_cast %0 : vector<1x5x32xf32> to vector<5x32xf32>
    %c0_2 = arith.constant 0 : index
    %c0_3 = arith.constant 0 : index
    %2 = vector.load %arg2[%c0_2, %c0_3] : memref<1x32xf32, #tpu.memory_space<vmem>>, vector<1x32xf32>
    %c0_4 = arith.constant 0 : index
    %c0_5 = arith.constant 0 : index
    %3 = vector.load %arg3[%c0_4, %c0_5] : memref<1x32xf32, #tpu.memory_space<vmem>>, vector<1x32xf32>
    %cst = arith.constant dense<0.000000e+00> : vector<5xf32>
    %4 = vector.multi_reduction <add>, %1, %cst [1] : vector<5x32xf32> to vector<5xf32>
    %5 = vector.shape_cast %4 : vector<5xf32> to vector<5x1xf32>
    %cst_6 = arith.constant 3.200000e+01 : f32
    %6 = vector.broadcast %cst_6 : f32 to vector<5x1xf32>
    %7 = arith.divf %5, %6 : vector<5x1xf32>
    %8 = vector.broadcast %7 : vector<5x1xf32> to vector<5x32xf32>
    %9 = arith.subf %1, %8 : vector<5x32xf32>
    %10 = arith.mulf %9, %9 : vector<5x32xf32>
    %cst_7 = arith.constant dense<0.000000e+00> : vector<5xf32>
    %11 = vector.multi_reduction <add>, %10, %cst_7 [1] : vector<5x32xf32> to vector<5xf32>
    %12 = vector.shape_cast %11 : vector<5xf32> to vector<5x1xf32>
    %cst_8 = arith.constant 3.200000e+01 : f32
    %13 = vector.broadcast %cst_8 : f32 to vector<5x1xf32>
    %14 = arith.divf %12, %13 : vector<5x1xf32>
    %cst_9 = arith.constant 9.99999974E-6 : f32
    %15 = vector.broadcast %cst_9 : f32 to vector<5x1xf32>
    %16 = arith.addf %14, %15 : vector<5x1xf32>
    %17 = math.rsqrt %16 : vector<5x1xf32>
    %18 = vector.broadcast %17 : vector<5x1xf32> to vector<5x32xf32>
    %19 = arith.mulf %9, %18 : vector<5x32xf32>
    %20 = vector.broadcast %2 : vector<1x32xf32> to vector<5x32xf32>
    %21 = arith.mulf %19, %20 : vector<5x32xf32>
    %22 = vector.broadcast %3 : vector<1x32xf32> to vector<5x32xf32>
    %23 = arith.addf %21, %22 : vector<5x32xf32>
    %24 = arith.truncf %23 : vector<5x32xf32> to vector<5x32xbf16>
    %c0_10 = arith.constant 0 : index
    %c0_11 = arith.constant 0 : index
    %25 = vector.load %arg4[%c0_10, %c0_11] : memref<32x64xbf16, #tpu.memory_space<vmem>>, vector<32x64xbf16>
    %cst_12 = arith.constant dense<0.000000e+00> : vector<5x64xf32>
    %26 = tpu.matmul %24, %25, %cst_12 {dimension_numbers = #tpu.dot_dimension_numbers<[1], [0], [0], [1], [0, 0, 1, 1], [], []>} : vector<5x32xbf16>, vector<32x64xbf16>, vector<5x64xf32> -> vector<5x64xf32>
    %c0_13 = arith.constant 0 : index
    %c0_14 = arith.constant 0 : index
    %27 = vector.load %arg5[%c0_13, %c0_14] : memref<1x64xf32, #tpu.memory_space<vmem>>, vector<1x64xf32>
    %28 = vector.broadcast %27 : vector<1x64xf32> to vector<5x64xf32>
    %29 = arith.addf %26, %28 : vector<5x64xf32>
    %cst_15 = arith.constant 1.702000e+00 : f32
    %30 = vector.broadcast %cst_15 : f32 to vector<5x64xf32>
    %31 = arith.mulf %30, %29 : vector<5x64xf32>
    %32 = arith.negf %31 : vector<5x64xf32>
    %33 = math.exp %32 : vector<5x64xf32>
    %cst_16 = arith.constant 1.000000e+00 : f32
    %34 = vector.broadcast %cst_16 : f32 to vector<5x64xf32>
    %35 = arith.addf %34, %33 : vector<5x64xf32>
    %36 = arith.divf %34, %35 : vector<5x64xf32>
    %37 = arith.mulf %29, %36 : vector<5x64xf32>
    %38 = arith.truncf %37 : vector<5x64xf32> to vector<5x64xbf16>
    %c0_17 = arith.constant 0 : index
    %c0_18 = arith.constant 0 : index
    %39 = vector.load %arg6[%c0_17, %c0_18] : memref<64x32xbf16, #tpu.memory_space<vmem>>, vector<64x32xbf16>
    %cst_19 = arith.constant dense<0.000000e+00> : vector<5x32xf32>
    %40 = tpu.matmul %38, %39, %cst_19 {dimension_numbers = #tpu.dot_dimension_numbers<[1], [0], [0], [1], [0, 0, 1, 1], [], []>} : vector<5x64xbf16>, vector<64x32xbf16>, vector<5x32xf32> -> vector<5x32xf32>
    %c0_20 = arith.constant 0 : index
    %c0_21 = arith.constant 0 : index
    %41 = vector.load %arg7[%c0_20, %c0_21] : memref<1x32xf32, #tpu.memory_space<vmem>>, vector<1x32xf32>
    %42 = vector.broadcast %41 : vector<1x32xf32> to vector<5x32xf32>
    %43 = arith.addf %40, %42 : vector<5x32xf32>
    %44 = arith.addf %1, %43 : vector<5x32xf32>
    %c0_22 = arith.constant 0 : index
    %c0_23 = arith.constant 0 : index
    %c0_24 = arith.constant 0 : index
    %45 = vector.load %arg8[%c0_22, %c0_23, %c0_24] : memref<1x5x32xf32, #tpu.memory_space<vmem>>, vector<1x5x32xf32>
    %46 = vector.shape_cast %45 : vector<1x5x32xf32> to vector<5x32xf32>
    %47 = vector.shape_cast %44 : vector<5x32xf32> to vector<1x5x32xf32>
    tpu.vector_store %arg8[%c0_22, %c0_23, %c0_24], %47 {strides = array<i32>} : memref<1x5x32xf32, #tpu.memory_space<vmem>>, vector<1x5x32xf32>,
    return
  }
  func.func @transform_0(%arg0: i32) -> (i32, i32, i32) {
    %c0_i32 = arith.constant 0 : i32
    %c0_i32_0 = arith.constant 0 : i32
    %c0_i32_1 = arith.constant 0 : i32
    return %arg0, %c0_i32, %c0_i32_0 : i32, i32, i32
  }
  func.func @transform_1(%arg0: i32) -> (i32, i32) {
    %c0_i32 = arith.constant 0 : i32
    %c0_i32_0 = arith.constant 0 : i32
    %c0_i32_1 = arith.constant 0 : i32
    return %c0_i32, %c0_i32_0 : i32, i32
  }
  func.func @transform_2(%arg0: i32) -> (i32, i32) {
    %c0_i32 = arith.constant 0 : i32
    %c0_i32_0 = arith.constant 0 : i32
    %c0_i32_1 = arith.constant 0 : i32
    return %c0_i32, %c0_i32_0 : i32, i32
  }
  func.func @transform_3(%arg0: i32) -> (i32, i32) {
    %c0_i32 = arith.constant 0 : i32
    %c0_i32_0 = arith.constant 0 : i32
    %c0_i32_1 = arith.constant 0 : i32
    return %c0_i32, %c0_i32_0 : i32, i32
  }
  func.func @transform_4(%arg0: i32) -> (i32, i32) {
    %c0_i32 = arith.constant 0 : i32
    %c0_i32_0 = arith.constant 0 : i32
    %c0_i32_1 = arith.constant 0 : i32
    return %c0_i32, %c0_i32_0 : i32, i32
  }
  func.func @transform_5(%arg0: i32) -> (i32, i32) {
    %c0_i32 = arith.constant 0 : i32
    %c0_i32_0 = arith.constant 0 : i32
    %c0_i32_1 = arith.constant 0 : i32
    return %c0_i32, %c0_i32_0 : i32, i32
  }
  func.func @transform_6(%arg0: i32) -> (i32, i32) {
    %c0_i32 = arith.constant 0 : i32
    %c0_i32_0 = arith.constant 0 : i32
    %c0_i32_1 = arith.constant 0 : i32
    return %c0_i32, %c0_i32_0 : i32, i32
  }
  func.func @transform_7(%arg0: i32) -> (i32, i32, i32) {
    %c0_i32 = arith.constant 0 : i32
    %c0_i32_0 = arith.constant 0 : i32
    %c0_i32_1 = arith.constant 0 : i32
    return %arg0, %c0_i32, %c0_i32_0 : i32, i32, i32
  }
}

module attributes {stable_mosaic.version = 11 : i64} {
  func.func @_pooler_head_kernel(%arg0: i32, %arg1: memref<2x32xf32, #tpu.memory_space<vmem>>, %arg2: memref<1x32xf32, #tpu.memory_space<vmem>>, %arg3: memref<1x32xf32, #tpu.memory_space<vmem>>, %arg4: memref<32x128xbf16, #tpu.memory_space<vmem>>, %arg5: memref<1x128xf32, #tpu.memory_space<vmem>>, %arg6: memref<2x128xf32, #tpu.memory_space<vmem>>) attributes {dimension_semantics = [#tpu.dimension_semantics<arbitrary>], iteration_bounds = array<i64: 1>, scalar_prefetch = 0 : i64, scratch_operands = 0 : i64, tpu.core_type = #tpu.core_type<tc>, window_params = [{pipeline_mode = #tpu.pipeline_mode<synchronous>, transform_indices = @transform_0, window_bounds = array<i64: 2, 32>}, {pipeline_mode = #tpu.pipeline_mode<synchronous>, transform_indices = @transform_1, window_bounds = array<i64: 1, 32>}, {pipeline_mode = #tpu.pipeline_mode<synchronous>, transform_indices = @transform_2, window_bounds = array<i64: 1, 32>}, {pipeline_mode = #tpu.pipeline_mode<synchronous>, transform_indices = @transform_3, window_bounds = array<i64: 32, 128>}, {pipeline_mode = #tpu.pipeline_mode<synchronous>, transform_indices = @transform_4, window_bounds = array<i64: 1, 128>}, {pipeline_mode = #tpu.pipeline_mode<synchronous>, transform_indices = @transform_5, window_bounds = array<i64: 2, 128>}]} {
    %c0 = arith.constant 0 : index
    %c0_0 = arith.constant 0 : index
    %0 = vector.load %arg1[%c0, %c0_0] : memref<2x32xf32, #tpu.memory_space<vmem>>, vector<2x32xf32>
    %c0_1 = arith.constant 0 : index
    %c0_2 = arith.constant 0 : index
    %1 = vector.load %arg2[%c0_1, %c0_2] : memref<1x32xf32, #tpu.memory_space<vmem>>, vector<1x32xf32>
    %c0_3 = arith.constant 0 : index
    %c0_4 = arith.constant 0 : index
    %2 = vector.load %arg3[%c0_3, %c0_4] : memref<1x32xf32, #tpu.memory_space<vmem>>, vector<1x32xf32>
    %cst = arith.constant dense<0.000000e+00> : vector<2xf32>
    %3 = vector.multi_reduction <add>, %0, %cst [1] : vector<2x32xf32> to vector<2xf32>
    %4 = vector.shape_cast %3 : vector<2xf32> to vector<2x1xf32>
    %cst_5 = arith.constant 3.200000e+01 : f32
    %5 = vector.broadcast %cst_5 : f32 to vector<2x1xf32>
    %6 = arith.divf %4, %5 : vector<2x1xf32>
    %7 = vector.broadcast %6 : vector<2x1xf32> to vector<2x32xf32>
    %8 = arith.subf %0, %7 : vector<2x32xf32>
    %9 = arith.mulf %8, %8 : vector<2x32xf32>
    %cst_6 = arith.constant dense<0.000000e+00> : vector<2xf32>
    %10 = vector.multi_reduction <add>, %9, %cst_6 [1] : vector<2x32xf32> to vector<2xf32>
    %11 = vector.shape_cast %10 : vector<2xf32> to vector<2x1xf32>
    %cst_7 = arith.constant 3.200000e+01 : f32
    %12 = vector.broadcast %cst_7 : f32 to vector<2x1xf32>
    %13 = arith.divf %11, %12 : vector<2x1xf32>
    %cst_8 = arith.constant 9.99999974E-6 : f32
    %14 = vector.broadcast %cst_8 : f32 to vector<2x1xf32>
    %15 = arith.addf %13, %14 : vector<2x1xf32>
    %16 = math.rsqrt %15 : vector<2x1xf32>
    %17 = vector.broadcast %16 : vector<2x1xf32> to vector<2x32xf32>
    %18 = arith.mulf %8, %17 : vector<2x32xf32>
    %19 = vector.broadcast %1 : vector<1x32xf32> to vector<2x32xf32>
    %20 = arith.mulf %18, %19 : vector<2x32xf32>
    %21 = vector.broadcast %2 : vector<1x32xf32> to vector<2x32xf32>
    %22 = arith.addf %20, %21 : vector<2x32xf32>
    %23 = arith.truncf %22 : vector<2x32xf32> to vector<2x32xbf16>
    %c0_9 = arith.constant 0 : index
    %c0_10 = arith.constant 0 : index
    %24 = vector.load %arg4[%c0_9, %c0_10] : memref<32x128xbf16, #tpu.memory_space<vmem>>, vector<32x128xbf16>
    %cst_11 = arith.constant dense<0.000000e+00> : vector<2x128xf32>
    %25 = tpu.matmul %23, %24, %cst_11 {dimension_numbers = #tpu.dot_dimension_numbers<[1], [0], [0], [1], [0, 0, 1, 1], [], []>} : vector<2x32xbf16>, vector<32x128xbf16>, vector<2x128xf32> -> vector<2x128xf32>
    %c0_12 = arith.constant 0 : index
    %c0_13 = arith.constant 0 : index
    %26 = vector.load %arg5[%c0_12, %c0_13] : memref<1x128xf32, #tpu.memory_space<vmem>>, vector<1x128xf32>
    %27 = vector.broadcast %26 : vector<1x128xf32> to vector<2x128xf32>
    %28 = arith.addf %25, %27 : vector<2x128xf32>
    %c0_14 = arith.constant 0 : index
    %c0_15 = arith.constant 0 : index
    %29 = vector.load %arg6[%c0_14, %c0_15] : memref<2x128xf32, #tpu.memory_space<vmem>>, vector<2x128xf32>
    tpu.vector_store %arg6[%c0_14, %c0_15], %28 {strides = array<i32>} : memref<2x128xf32, #tpu.memory_space<vmem>>, vector<2x128xf32>,
    return
  }
  func.func @transform_0(%arg0: i32) -> (i32, i32) {
    %c0_i32 = arith.constant 0 : i32
    %c0_i32_0 = arith.constant 0 : i32
    %c0_i32_1 = arith.constant 0 : i32
    return %c0_i32, %c0_i32_0 : i32, i32
  }
  func.func @transform_1(%arg0: i32) -> (i32, i32) {
    %c0_i32 = arith.constant 0 : i32
    %c0_i32_0 = arith.constant 0 : i32
    %c0_i32_1 = arith.constant 0 : i32
    return %c0_i32, %c0_i32_0 : i32, i32
  }
  func.func @transform_2(%arg0: i32) -> (i32, i32) {
    %c0_i32 = arith.constant 0 : i32
    %c0_i32_0 = arith.constant 0 : i32
    %c0_i32_1 = arith.constant 0 : i32
    return %c0_i32, %c0_i32_0 : i32, i32
  }
  func.func @transform_3(%arg0: i32) -> (i32, i32) {
    %c0_i32 = arith.constant 0 : i32
    %c0_i32_0 = arith.constant 0 : i32
    %c0_i32_1 = arith.constant 0 : i32
    return %c0_i32, %c0_i32_0 : i32, i32
  }
  func.func @transform_4(%arg0: i32) -> (i32, i32) {
    %c0_i32 = arith.constant 0 : i32
    %c0_i32_0 = arith.constant 0 : i32
    %c0_i32_1 = arith.constant 0 : i32
    return %c0_i32, %c0_i32_0 : i32, i32
  }
  func.func @transform_5(%arg0: i32) -> (i32, i32) {
    %c0_i32 = arith.constant 0 : i32
    %c0_i32_0 = arith.constant 0 : i32
    %c0_i32_1 = arith.constant 0 : i32
    return %c0_i32, %c0_i32_0 : i32, i32
  }
}

</mosaic_0001>

<llo_original>
// kernel: clip_vision_classifier_forward.10
$region0: #{clip_vision_classifier_forward.10}
  #allocation0 [shape = 'u32[]', space=smem, size = 0x4, offset = 0x4, fixed_abs, tag = 'smem constant byte address 0x4 - core index']
  #allocation1 [shape = 'u32[144,128]{1,0:T(1,128)}', space=vmem, size = 0x12000, scoped, tag = 'internal scratch']
  %s0 = inlined_call_operand.vmem [shape: f32[2,5,32], index: 0, kind: input, shape index: {}]
  %s1 = inlined_call_operand.vmem [shape: f32[1,32], index: 1, kind: input, shape index: {}]
  %s2 = inlined_call_operand.vmem [shape: f32[1,32], index: 2, kind: input, shape index: {}]
  %s3 = inlined_call_operand.vmem [shape: f32[2,5,32], index: 3, kind: output, shape index: {}]
  %s4 = sld [smem:[#allocation0]]
  $region45: #{clip_vision_classifier_forward.10} parent=0
    _
  %s6 = ssub.s32 1, %s4
  %s7 = scalar_select 0, %s6, %s4
  loop: start=0, step=1, limit=4
  $region2: #{clip_vision_classifier_forward.10} parent=0 // loop_pre_header
    _
  $region3: #{clip_vision_classifier_forward.10} parent=0 // loop_header
    %s9 = sphi 0, %s13
    %p10 = scmp.ge.s32.totalorder %s9, 4
    %s19 = sphi 0, %s21
    %s22 = sphi 0, %s19
    %s23 = sphi 0, %s22
    %s39 = sphi 0, %s23
    %s43 = sphi 0, %s43
    %s45 = sphi 0, %s43
    %s46 = sphi 0, %s45
    %s60 = sphi 0, %s46
    %s64 = sphi 0, %s64
    %s66 = sphi 0, %s64
    %s67 = sphi 0, %s66
    %s81 = sphi 0, %s67
    %s87 = sphi 0, %s89
    %s90 = sphi 0, %s87
    %s91 = sphi 0, %s90
    %s107 = sphi 0, %s91
  $region4: #{clip_vision_classifier_forward.10} parent=0 // loop_header_branch
    %12 = sbr.rel (%p10) target = $region8
  $region5: #{clip_vision_classifier_forward.10} parent=0 // loop_body
    %s14 = ssub.s32 %s9, 1
    %s15 = ssub.s32 %s9, 2
    %s16 = sadd.s32 %s9, 1
    %s17 = ssub.s32 %s9, %s16
    %p18 = scmp.eq.s32.totalorder %s17, 0
    %s20 = sadd.s32 %s19, 1
    %s21 = scalar_select %p18, %s19, %s20
    %p24 = pneg %p18
    %p25 = scmp.eq.s32.totalorder %s9, 1
    %p26 = por %p24, %p25
    %p27 = scmp.ne.s32.totalorder %s19, %s22
    %p28 = scmp.eq.s32.totalorder %s9, 0
    %p29 = por %p27, %p28
    %p30 = scmp.ne.s32.totalorder %s19, %s22
    %p31 = scmp.eq.s32.totalorder %s14, 1
    %p32 = por %p30, %p31
    %p33 = scmp.ne.s32.totalorder %s22, %s23
    %p34 = scmp.eq.s32.totalorder %s14, 0
    %p35 = por %p33, %p34
    %p36 = scmp.ne.s32.totalorder %s22, %s23
    %p37 = scmp.eq.s32.totalorder %s15, 1
    %p38 = por %p36, %p37
    %p40 = scmp.ne.s32.totalorder %s23, %s39
    %p41 = scmp.eq.s32.totalorder %s15, 0
    %p42 = por %p40, %p41
    %s44 = sadd.s32 %s43, 1
    %p47 = scmp.eq.s32.totalorder %s9, 1
    %p48 = scmp.ne.s32.totalorder %s43, %s45
    %p49 = scmp.eq.s32.totalorder %s9, 0
    %p50 = por %p48, %p49
    %p51 = scmp.ne.s32.totalorder %s43, %s45
    %p52 = scmp.eq.s32.totalorder %s14, 1
    %p53 = por %p51, %p52
    %p54 = scmp.ne.s32.totalorder %s45, %s46
    %p55 = scmp.eq.s32.totalorder %s14, 0
    %p56 = por %p54, %p55
    %p57 = scmp.ne.s32.totalorder %s45, %s46
    %p58 = scmp.eq.s32.totalorder %s15, 1
    %p59 = por %p57, %p58
    %p61 = scmp.ne.s32.totalorder %s46, %s60
    %p62 = scmp.eq.s32.totalorder %s15, 0
    %p63 = por %p61, %p62
    %s65 = sadd.s32 %s64, 1
    %p68 = scmp.eq.s32.totalorder %s9, 1
    %p69 = scmp.ne.s32.totalorder %s64, %s66
    %p70 = scmp.eq.s32.totalorder %s9, 0
    %p71 = por %p69, %p70
    %p72 = scmp.ne.s32.totalorder %s64, %s66
    %p73 = scmp.eq.s32.totalorder %s14, 1
    %p74 = por %p72, %p73
    %p75 = scmp.ne.s32.totalorder %s66, %s67
    %p76 = scmp.eq.s32.totalorder %s14, 0
    %p77 = por %p75, %p76
    %p78 = scmp.ne.s32.totalorder %s66, %s67
    %p79 = scmp.eq.s32.totalorder %s15, 1
    %p80 = por %p78, %p79
    %p82 = scmp.ne.s32.totalorder %s67, %s81
    %p83 = scmp.eq.s32.totalorder %s15, 0
    %p84 = por %p82, %p83
    %s85 = ssub.s32 %s9, %s16
    %p86 = scmp.eq.s32.totalorder %s85, 0
    %s88 = sadd.s32 %s87, 1
    %s89 = scalar_select %p86, %s87, %s88
    %p92 = pneg %p86
    %p93 = scmp.eq.s32.totalorder %s9, 1
    %p94 = por %p92, %p93
    %p95 = scmp.ne.s32.totalorder %s87, %s90
    %p96 = scmp.eq.s32.totalorder %s9, 0
    %p97 = por %p95, %p96
    %p98 = scmp.ne.s32.totalorder %s87, %s90
    %p99 = scmp.eq.s32.totalorder %s14, 1
    %p100 = por %p98, %p99
    %p101 = scmp.ne.s32.totalorder %s90, %s91
    %p102 = scmp.eq.s32.totalorder %s14, 0
    %p103 = por %p101, %p102
    %p104 = scmp.ne.s32.totalorder %s90, %s91
    %p105 = scmp.eq.s32.totalorder %s15, 1
    %p106 = por %p104, %p105
    %p108 = scmp.ne.s32.totalorder %s91, %s107
    %p109 = scmp.eq.s32.totalorder %s15, 0
    %p110 = por %p108, %p109
    %p111 = scmp.le.s32.totalorder 1, %s9
    %p112 = scmp.lt.s32.totalorder %s9, 3
    %p113 = pnand %p111, %p112
    %p114 = pneg %p113
    // Predicated region
    $region9: #{clip_vision_classifier_forward.10} parent=5 // pred_check
      _
    $region10: #{clip_vision_classifier_forward.10} parent=5 // pred_check_branch
      %116 = sbr.rel (%p113) target = $region12
    $region11: #{clip_vision_classifier_forward.10} parent=5 // pred_region
      %s117 = ssub.s32 %s9, 1
      // Predicated region
      $region13: #{clip_vision_classifier_forward.10} parent=11 // pred_check
        %p118 = pneg %p56
      $region14: #{clip_vision_classifier_forward.10} parent=11 // pred_check_branch
        %120 = sbr.rel (%p118) target = $region16
      $region15: #{clip_vision_classifier_forward.10} parent=11 // pred_region
        _
      $region16: #{clip_vision_classifier_forward.10} parent=11 // pred_fallthru
        _
      // Predicated region
      $region17: #{clip_vision_classifier_forward.10} parent=11 // pred_check
        %p121 = pneg %p77
      $region18: #{clip_vision_classifier_forward.10} parent=11 // pred_check_branch
        %123 = sbr.rel (%p121) target = $region20
      $region19: #{clip_vision_classifier_forward.10} parent=11 // pred_region
        _
      $region20: #{clip_vision_classifier_forward.10} parent=11 // pred_fallthru
        _
    $region12: #{clip_vision_classifier_forward.10} parent=5 // pred_fallthru
      _
    %p124 = scmp.lt.s32.totalorder %s9, 2
    // Predicated region
    $region21: #{clip_vision_classifier_forward.10} parent=5 // pred_check
      %p125 = pneg %p124
    $region22: #{clip_vision_classifier_forward.10} parent=5 // pred_check_branch
      %127 = sbr.rel (%p125) target = $region24
    $region23: #{clip_vision_classifier_forward.10} parent=5 // pred_region
      // Predicated region
      $region25: #{clip_vision_classifier_forward.10} parent=23 // pred_check
        %p128 = pneg %p29
      $region26: #{clip_vision_classifier_forward.10} parent=23 // pred_check_branch
        %130 = sbr.rel (%p128) target = $region28
      $region27: #{clip_vision_classifier_forward.10} parent=23 // pred_region
        %p131 = scmp.lt.s32.totalorder %s9, 1
        %s132 = scalar_select %p131, %s9, 1
        %s133 = smul.addr %s132, 8
        %s134 = scalar_lea.vmem %s0, %s133
      $region28: #{clip_vision_classifier_forward.10} parent=23 // pred_fallthru
        _
    $region24: #{clip_vision_classifier_forward.10} parent=5 // pred_fallthru
      _
    %p135 = scmp.le.s32.totalorder 1, %s9
    %p136 = scmp.lt.s32.totalorder %s9, 3
    %p137 = pnand %p135, %p136
    %p138 = pneg %p137
    // Predicated region
    $region29: #{clip_vision_classifier_forward.10} parent=5 // pred_check
      _
    $region30: #{clip_vision_classifier_forward.10} parent=5 // pred_check_branch
      %140 = sbr.rel (%p137) target = $region32
    $region31: #{clip_vision_classifier_forward.10} parent=5 // pred_region
      %s141 = ssub.s32 %s9, 1
      %p142 = scmp.lt.s32.totalorder %s14, 1
      %s143 = scalar_select %p142, %s14, 1
      %s144 = smul.addr %s143, 8
      %s145 = scalar_lea.vmem %s0, %s144
      %p146 = pneg %p35
      %p147 = pneg %p32
      %p148 = pneg %p56
      %p149 = pneg %p53
      %p150 = pneg %p77
      %p151 = pneg %p74
      %p152 = pneg %p103
      %p153 = pneg %p100
      %p154 = scmp.lt.s32.totalorder %s14, 1
      %s155 = scalar_select %p154, %s14, 1
      %s156 = smul.addr %s155, 8
      %s157 = scalar_lea.vmem %s3, %s156
      %p158 = scmp.lt.s32.totalorder %s14, 1
      %s159 = scalar_select %p158, %s14, 1
      %s160 = smul.addr %s159, 8
      %s161 = scalar_lea.vmem %s0, %s160
      %p162 = scmp.lt.s32.totalorder %s14, 1
      %s163 = scalar_select %p162, %s14, 1
      %s164 = smul.addr %s163, 8
      %s165 = scalar_lea.vmem %s3, %s164
      %v166 = vld [vmem:[%s161] sm:$0x1f]
      %v167 = vld [vmem:[%s1] sm:$0x1]
      %v168 = vld [vmem:[%s2] sm:$0x1]
      %vm169 = vcmask 258048
      %v170 = vsel %vm169, %v166, 0.0
      %171 = vadd.xlane.f32.xlu0 %v170
      %v172 = vpop.xlane.xlu0 %171
      %v173 = vrcp.pop 32.0
      %v174 = vmul.f32 %v172, %v173
      %v175 = vsub.f32 %v166, %v174
      %v176 = vmul.f32 %v175, %v175
      %v177 = vsel %vm169, %v176, 0.0
      %178 = vadd.xlane.f32.xlu0 %v177
      %v179 = vpop.xlane.xlu0 %178
      %v180 = vmul.f32 %v179, %v173
      %v181 = vadd.f32 %v180, 1e-05
      %v182 = vrsqrt.pop %v181
      %v183 = vmul.f32 %v175, %v182
      %v185 = vlaneseq
      %v186 = vshrl.u32 %v185, 7
      %v187 = vsub.s32 0, %v186
      %v188 = vrot.slane %v167, %v187
      %v190 = vmul.f32 %v183, %v188
      %v192 = vlaneseq
      %v193 = vshrl.u32 %v192, 7
      %v194 = vsub.s32 0, %v193
      %v195 = vrot.slane %v168, %v194
      %v197 = vadd.f32 %v190, %v195
      %198 = vst.msk [vmem:[%s165] sm:$0x1f] %vm169, %v197
      %p199 = scmp.lt.s32.totalorder %s14, 1
      %s200 = scalar_select %p199, %s14, 1
      %s201 = smul.addr %s200, 8
      %s202 = scalar_lea.vmem %s3, %s201
      // Predicated region
      $region33: #{clip_vision_classifier_forward.10} parent=31 // pred_check
        %p203 = pneg %p100
      $region34: #{clip_vision_classifier_forward.10} parent=31 // pred_check_branch
        %205 = sbr.rel (%p203) target = $region36
      $region35: #{clip_vision_classifier_forward.10} parent=31 // pred_region
        _
      $region36: #{clip_vision_classifier_forward.10} parent=31 // pred_fallthru
        _
    $region32: #{clip_vision_classifier_forward.10} parent=5 // pred_fallthru
      _
    %p206 = scmp.le.s32.totalorder 2, %s9
    // Predicated region
    $region37: #{clip_vision_classifier_forward.10} parent=5 // pred_check
      %p207 = pneg %p206
    $region38: #{clip_vision_classifier_forward.10} parent=5 // pred_check_branch
      %209 = sbr.rel (%p207) target = $region40
    $region39: #{clip_vision_classifier_forward.10} parent=5 // pred_region
      %s210 = ssub.s32 %s9, 2
      // Predicated region
      $region41: #{clip_vision_classifier_forward.10} parent=39 // pred_check
        %p211 = pneg %p106
      $region42: #{clip_vision_classifier_forward.10} parent=39 // pred_check_branch
        %213 = sbr.rel (%p211) target = $region44
      $region43: #{clip_vision_classifier_forward.10} parent=39 // pred_region
        %p214 = scmp.lt.s32.totalorder %s15, 1
        %s215 = scalar_select %p214, %s15, 1
        %s216 = smul.addr %s215, 8
        %s217 = scalar_lea.vmem %s3, %s216
      $region44: #{clip_vision_classifier_forward.10} parent=39 // pred_fallthru
        _
    $region40: #{clip_vision_classifier_forward.10} parent=5 // pred_fallthru
      _
  $region6: #{clip_vision_classifier_forward.10} parent=0 // loop_footer
    %s13 = sadd.s32 1, %s9
  $region7: #{clip_vision_classifier_forward.10} parent=0 // loop_footer_branch
    %8 = sbr.rel target = $region3
  $region8: #{clip_vision_classifier_forward.10} parent=0 // loop_exit
    _

// kernel: clip_vision_classifier_forward.9
$region0: #{clip_vision_classifier_forward.9}
  #allocation0 [shape = 'u32[]', space=smem, size = 0x4, offset = 0x4, fixed_abs, tag = 'smem constant byte address 0x4 - core index']
  #allocation1 [shape = 'u32[144,128]{1,0:T(1,128)}', space=vmem, size = 0x12000, scoped, tag = 'internal scratch']
  %s0 = inlined_call_operand.vmem [shape: f32[2,4,192], index: 0, kind: input, shape index: {}]
  %s1 = inlined_call_operand.vmem [shape: bf16[192,32], index: 1, kind: input, shape index: {}]
  %s2 = inlined_call_operand.vmem [shape: f32[1,32], index: 2, kind: input, shape index: {}]
  %s3 = inlined_call_operand.vmem [shape: f32[2,4,32], index: 3, kind: output, shape index: {}]
  %s4 = sld [smem:[#allocation0]]
  $region45: #{clip_vision_classifier_forward.9} parent=0
    _
  %s6 = ssub.s32 1, %s4
  %s7 = scalar_select 0, %s6, %s4
  loop: start=0, step=1, limit=4
  $region2: #{clip_vision_classifier_forward.9} parent=0 // loop_pre_header
    _
  $region3: #{clip_vision_classifier_forward.9} parent=0 // loop_header
    %s9 = sphi 0, %s13
    %p10 = scmp.ge.s32.totalorder %s9, 4
    %s19 = sphi 0, %s21
    %s22 = sphi 0, %s19
    %s23 = sphi 0, %s22
    %s39 = sphi 0, %s23
    %s43 = sphi 0, %s43
    %s45 = sphi 0, %s43
    %s46 = sphi 0, %s45
    %s60 = sphi 0, %s46
    %s64 = sphi 0, %s64
    %s66 = sphi 0, %s64
    %s67 = sphi 0, %s66
    %s81 = sphi 0, %s67
    %s87 = sphi 0, %s89
    %s90 = sphi 0, %s87
    %s91 = sphi 0, %s90
    %s107 = sphi 0, %s91
  $region4: #{clip_vision_classifier_forward.9} parent=0 // loop_header_branch
    %12 = sbr.rel (%p10) target = $region8
  $region5: #{clip_vision_classifier_forward.9} parent=0 // loop_body
    %s14 = ssub.s32 %s9, 1
    %s15 = ssub.s32 %s9, 2
    %s16 = sadd.s32 %s9, 1
    %s17 = ssub.s32 %s9, %s16
    %p18 = scmp.eq.s32.totalorder %s17, 0
    %s20 = sadd.s32 %s19, 1
    %s21 = scalar_select %p18, %s19, %s20
    %p24 = pneg %p18
    %p25 = scmp.eq.s32.totalorder %s9, 1
    %p26 = por %p24, %p25
    %p27 = scmp.ne.s32.totalorder %s19, %s22
    %p28 = scmp.eq.s32.totalorder %s9, 0
    %p29 = por %p27, %p28
    %p30 = scmp.ne.s32.totalorder %s19, %s22
    %p31 = scmp.eq.s32.totalorder %s14, 1
    %p32 = por %p30, %p31
    %p33 = scmp.ne.s32.totalorder %s22, %s23
    %p34 = scmp.eq.s32.totalorder %s14, 0
    %p35 = por %p33, %p34
    %p36 = scmp.ne.s32.totalorder %s22, %s23
    %p37 = scmp.eq.s32.totalorder %s15, 1
    %p38 = por %p36, %p37
    %p40 = scmp.ne.s32.totalorder %s23, %s39
    %p41 = scmp.eq.s32.totalorder %s15, 0
    %p42 = por %p40, %p41
    %s44 = sadd.s32 %s43, 1
    %p47 = scmp.eq.s32.totalorder %s9, 1
    %p48 = scmp.ne.s32.totalorder %s43, %s45
    %p49 = scmp.eq.s32.totalorder %s9, 0
    %p50 = por %p48, %p49
    %p51 = scmp.ne.s32.totalorder %s43, %s45
    %p52 = scmp.eq.s32.totalorder %s14, 1
    %p53 = por %p51, %p52
    %p54 = scmp.ne.s32.totalorder %s45, %s46
    %p55 = scmp.eq.s32.totalorder %s14, 0
    %p56 = por %p54, %p55
    %p57 = scmp.ne.s32.totalorder %s45, %s46
    %p58 = scmp.eq.s32.totalorder %s15, 1
    %p59 = por %p57, %p58
    %p61 = scmp.ne.s32.totalorder %s46, %s60
    %p62 = scmp.eq.s32.totalorder %s15, 0
    %p63 = por %p61, %p62
    %s65 = sadd.s32 %s64, 1
    %p68 = scmp.eq.s32.totalorder %s9, 1
    %p69 = scmp.ne.s32.totalorder %s64, %s66
    %p70 = scmp.eq.s32.totalorder %s9, 0
    %p71 = por %p69, %p70
    %p72 = scmp.ne.s32.totalorder %s64, %s66
    %p73 = scmp.eq.s32.totalorder %s14, 1
    %p74 = por %p72, %p73
    %p75 = scmp.ne.s32.totalorder %s66, %s67
    %p76 = scmp.eq.s32.totalorder %s14, 0
    %p77 = por %p75, %p76
    %p78 = scmp.ne.s32.totalorder %s66, %s67
    %p79 = scmp.eq.s32.totalorder %s15, 1
    %p80 = por %p78, %p79
    %p82 = scmp.ne.s32.totalorder %s67, %s81
    %p83 = scmp.eq.s32.totalorder %s15, 0
    %p84 = por %p82, %p83
    %s85 = ssub.s32 %s9, %s16
    %p86 = scmp.eq.s32.totalorder %s85, 0
    %s88 = sadd.s32 %s87, 1
    %s89 = scalar_select %p86, %s87, %s88
    %p92 = pneg %p86
    %p93 = scmp.eq.s32.totalorder %s9, 1
    %p94 = por %p92, %p93
    %p95 = scmp.ne.s32.totalorder %s87, %s90
    %p96 = scmp.eq.s32.totalorder %s9, 0
    %p97 = por %p95, %p96
    %p98 = scmp.ne.s32.totalorder %s87, %s90
    %p99 = scmp.eq.s32.totalorder %s14, 1
    %p100 = por %p98, %p99
    %p101 = scmp.ne.s32.totalorder %s90, %s91
    %p102 = scmp.eq.s32.totalorder %s14, 0
    %p103 = por %p101, %p102
    %p104 = scmp.ne.s32.totalorder %s90, %s91
    %p105 = scmp.eq.s32.totalorder %s15, 1
    %p106 = por %p104, %p105
    %p108 = scmp.ne.s32.totalorder %s91, %s107
    %p109 = scmp.eq.s32.totalorder %s15, 0
    %p110 = por %p108, %p109
    %p111 = scmp.le.s32.totalorder 1, %s9
    %p112 = scmp.lt.s32.totalorder %s9, 3
    %p113 = pnand %p111, %p112
    %p114 = pneg %p113
    // Predicated region
    $region9: #{clip_vision_classifier_forward.9} parent=5 // pred_check
      _
    $region10: #{clip_vision_classifier_forward.9} parent=5 // pred_check_branch
      %116 = sbr.rel (%p113) target = $region12
    $region11: #{clip_vision_classifier_forward.9} parent=5 // pred_region
      %s117 = ssub.s32 %s9, 1
      // Predicated region
      $region13: #{clip_vision_classifier_forward.9} parent=11 // pred_check
        %p118 = pneg %p56
      $region14: #{clip_vision_classifier_forward.9} parent=11 // pred_check_branch
        %120 = sbr.rel (%p118) target = $region16
      $region15: #{clip_vision_classifier_forward.9} parent=11 // pred_region
        _
      $region16: #{clip_vision_classifier_forward.9} parent=11 // pred_fallthru
        _
      // Predicated region
      $region17: #{clip_vision_classifier_forward.9} parent=11 // pred_check
        %p121 = pneg %p77
      $region18: #{clip_vision_classifier_forward.9} parent=11 // pred_check_branch
        %123 = sbr.rel (%p121) target = $region20
      $region19: #{clip_vision_classifier_forward.9} parent=11 // pred_region
        _
      $region20: #{clip_vision_classifier_forward.9} parent=11 // pred_fallthru
        _
    $region12: #{clip_vision_classifier_forward.9} parent=5 // pred_fallthru
      _
    %p124 = scmp.lt.s32.totalorder %s9, 2
    // Predicated region
    $region21: #{clip_vision_classifier_forward.9} parent=5 // pred_check
      %p125 = pneg %p124
    $region22: #{clip_vision_classifier_forward.9} parent=5 // pred_check_branch
      %127 = sbr.rel (%p125) target = $region24
    $region23: #{clip_vision_classifier_forward.9} parent=5 // pred_region
      // Predicated region
      $region25: #{clip_vision_classifier_forward.9} parent=23 // pred_check
        %p128 = pneg %p29
      $region26: #{clip_vision_classifier_forward.9} parent=23 // pred_check_branch
        %130 = sbr.rel (%p128) target = $region28
      $region27: #{clip_vision_classifier_forward.9} parent=23 // pred_region
        %p131 = scmp.lt.s32.totalorder %s9, 1
        %s132 = scalar_select %p131, %s9, 1
        %s133 = smul.addr %s132, 2
        %s134 = smul.addr %s133, 4
        %s135 = scalar_lea.vmem %s0, %s134
      $region28: #{clip_vision_classifier_forward.9} parent=23 // pred_fallthru
        _
    $region24: #{clip_vision_classifier_forward.9} parent=5 // pred_fallthru
      _
    %p136 = scmp.le.s32.totalorder 1, %s9
    %p137 = scmp.lt.s32.totalorder %s9, 3
    %p138 = pnand %p136, %p137
    %p139 = pneg %p138
    // Predicated region
    $region29: #{clip_vision_classifier_forward.9} parent=5 // pred_check
      _
    $region30: #{clip_vision_classifier_forward.9} parent=5 // pred_check_branch
      %141 = sbr.rel (%p138) target = $region32
    $region31: #{clip_vision_classifier_forward.9} parent=5 // pred_region
      %s142 = ssub.s32 %s9, 1
      %p143 = scmp.lt.s32.totalorder %s14, 1
      %s144 = scalar_select %p143, %s14, 1
      %s145 = smul.addr %s144, 2
      %s146 = smul.addr %s145, 4
      %s147 = scalar_lea.vmem %s0, %s146
      %p148 = pneg %p35
      %p149 = pneg %p32
      %p150 = pneg %p56
      %p151 = pneg %p53
      %p152 = pneg %p77
      %p153 = pneg %p74
      %p154 = pneg %p103
      %p155 = pneg %p100
      %p156 = scmp.lt.s32.totalorder %s14, 1
      %s157 = scalar_select %p156, %s14, 1
      %s158 = smul.addr %s157, 4
      %s159 = scalar_lea.vmem %s3, %s158
      %p160 = scmp.lt.s32.totalorder %s14, 1
      %s161 = scalar_select %p160, %s14, 1
      %s162 = smul.addr %s161, 2
      %s163 = smul.addr %s162, 4
      %s164 = scalar_lea.vmem %s0, %s163
      %p165 = scmp.lt.s32.totalorder %s14, 1
      %s166 = scalar_select %p165, %s14, 1
      %s167 = smul.addr %s166, 4
      %s168 = scalar_lea.vmem %s3, %s167
      %v170 = vld [vmem:[%s164] sm:$0xff]
      %v172 = vcombine.high %v170, %v170
      %v174 = vpack.c.bf16 %v170, %v170
      %v175 = vpack.c.bf16 %v172, %v172
      %v176 = vld [vmem:[%s1] sm:$0xf]
      %v177 = vld [vmem:[%s1 + $0x4] sm:$0xf]
      %v178 = vld [vmem:[%s1 + $0x8] sm:$0xf]
      %v179 = vld [vmem:[%s1 + $0xc] sm:$0xf]
      %v180 = vld [vmem:[%s1 + $0x10] sm:$0xf]
      %v181 = vld [vmem:[%s1 + $0x14] sm:$0xf]
      %v182 = vld [vmem:[%s1 + $0x18] sm:$0xf]
      %v183 = vld [vmem:[%s1 + $0x1c] sm:$0xf]
      %v184 = vld [vmem:[%s1 + $0x20] sm:$0xf]
      %v185 = vld [vmem:[%s1 + $0x24] sm:$0xf]
      %v186 = vld [vmem:[%s1 + $0x28] sm:$0xf]
      %v187 = vld [vmem:[%s1 + $0x2c] sm:$0xf]
      %v188 = vld [vmem:[%s1 + $0x30] sm:$0xf]
      %v189 = vld [vmem:[%s1 + $0x34] sm:$0xf]
      %v190 = vld [vmem:[%s1 + $0x38] sm:$0xf]
      %v191 = vld [vmem:[%s1 + $0x3c] sm:$0xf]
      %v192 = vld [vmem:[%s1 + $0x40] sm:$0xf]
      %v193 = vld [vmem:[%s1 + $0x44] sm:$0xf]
      %v194 = vld [vmem:[%s1 + $0x48] sm:$0xf]
      %v195 = vld [vmem:[%s1 + $0x4c] sm:$0xf]
      %v196 = vld [vmem:[%s1 + $0x50] sm:$0xf]
      %v197 = vld [vmem:[%s1 + $0x54] sm:$0xf]
      %v198 = vld [vmem:[%s1 + $0x58] sm:$0xf]
      %v199 = vld [vmem:[%s1 + $0x5c] sm:$0xf]
      %v200 = vld [vmem:[%s2] sm:$0x1]
      %v202 = vlaneseq
      %v203 = vshrl.u32 %v202, 7
      %v204 = vsub.s32 0, %v203
      %v205 = vrot.slane %v200, %v204
      %v231 = vunpack.c.l.b16 %v176
      %v232 = vunpack.c.l.b16 %v177
      %v233 = vunpack.c.l.b16 %v178
      %v234 = vunpack.c.l.b16 %v179
      %v235 = vunpack.c.l.b16 %v180
      %v236 = vunpack.c.l.b16 %v181
      %v237 = vunpack.c.l.b16 %v182
      %v238 = vunpack.c.l.b16 %v183
      %v239 = vunpack.c.l.b16 %v184
      %v240 = vunpack.c.l.b16 %v185
      %v241 = vunpack.c.l.b16 %v186
      %v242 = vunpack.c.l.b16 %v187
      %v243 = vunpack.c.l.b16 %v188
      %v244 = vunpack.c.l.b16 %v189
      %v245 = vunpack.c.l.b16 %v190
      %v246 = vunpack.c.l.b16 %v191
      %v247 = vunpack.c.l.b16 %v192
      %v248 = vunpack.c.l.b16 %v193
      %v249 = vunpack.c.l.b16 %v194
      %v250 = vunpack.c.l.b16 %v195
      %v251 = vunpack.c.l.b16 %v196
      %v252 = vunpack.c.l.b16 %v197
      %v253 = vunpack.c.l.b16 %v198
      %v254 = vunpack.c.l.b16 %v199
      %v255 = vpack.c.b16 %v232, %v231
      %v256 = vpack.c.b16 %v234, %v233
      %v257 = vpack.c.b16 %v236, %v235
      %v258 = vpack.c.b16 %v238, %v237
      %v259 = vpack.c.b16 %v240, %v239
      %v260 = vpack.c.b16 %v242, %v241
      %v261 = vpack.c.b16 %v244, %v243
      %v262 = vpack.c.b16 %v246, %v245
      %v263 = vpack.c.b16 %v248, %v247
      %v264 = vpack.c.b16 %v250, %v249
      %v265 = vpack.c.b16 %v252, %v251
      %v266 = vpack.c.b16 %v254, %v253
      %vm279 = vcmask 523264
      %v281 = vsel %vm279, %v175, 0
      %283 = vmatprep.subr.bf16.mxu0 0
      %284 = vmatpush1.bf16.msra.mxu0 %v255
      %285 = vmatprep.subr.bf16.mxu0 0
      %286 = vmatpush1.bf16.msra.mxu0 %v256
      %287 = vmatprep.subr.bf16.mxu0 0
      %288 = vmatpush1.bf16.msra.mxu0 %v257
      %289 = vmatprep.subr.bf16.mxu0 0
      %290 = vmatpush1.bf16.msra.mxu0 %v258
      %291 = vmatprep.subr.bf16.mxu0 0
      %292 = vmatpush1.bf16.msra.mxu0 %v259
      %293 = vmatprep.subr.bf16.mxu0 0
      %294 = vmatpush1.bf16.msra.mxu0 %v260
      %295 = vmatprep.subr.bf16.mxu0 0
      %296 = vmatpush1.bf16.msra.mxu0 %v261
      %297 = vmatprep.subr.bf16.mxu0 0
      %298 = vmatpush1.bf16.msra.mxu0 %v262
      %299 = vmatprep.subr.bf16.mxu0 0
      %300 = vmatpush1.bf16.msra.mxu0 %v263
      %301 = vmatprep.subr.bf16.mxu0 0
      %302 = vmatpush1.bf16.msra.mxu0 %v264
      %303 = vmatprep.subr.bf16.mxu0 0
      %304 = vmatpush1.bf16.msra.mxu0 %v265
      %305 = vmatprep.subr.bf16.mxu0 0
      %306 = vmatpush1.bf16.msra.mxu0 %v266
      %307 = vmatprep.subr.bf16.mxu0 0
      %308 = vmatpush1.bf16.msra.mxu0 0
      %309 = vmatprep.subr.bf16.mxu0 0
      %310 = vmatpush1.bf16.msra.mxu0 0
      %311 = vmatprep.subr.bf16.mxu0 0
      %312 = vmatpush1.bf16.msra.mxu0 0
      %313 = vmatprep.subr.bf16.mxu0 0
      %314 = vmatpush1.bf16.msra.mxu0 0
      %315 = vmatprep.mubr.bf16.mxu0 %v281
      %316 = vmatmul.mubr.bf16.gmra.mrb[0].mxu0 %v174
      %v317 = vpop.f32.mrb[0].mxu0
      %v318 = vadd.f32 %v205, %v317
      %v319 = vpop.f32.mrb[0].mxu0
      %v320 = vpop.f32.mrb[0].mxu0
      %v321 = vpop.f32.mrb[0].mxu0
      %322 = vdwg.mxu0
      %vm323 = vcmask 257024
      %324 = vst.msk [vmem:[%s168] sm:$0xf] %vm323, %v318
      %p325 = scmp.lt.s32.totalorder %s14, 1
      %s326 = scalar_select %p325, %s14, 1
      %s327 = smul.addr %s326, 4
      %s328 = scalar_lea.vmem %s3, %s327
      // Predicated region
      $region33: #{clip_vision_classifier_forward.9} parent=31 // pred_check
        %p329 = pneg %p100
      $region34: #{clip_vision_classifier_forward.9} parent=31 // pred_check_branch
        %331 = sbr.rel (%p329) target = $region36
      $region35: #{clip_vision_classifier_forward.9} parent=31 // pred_region
        _
      $region36: #{clip_vision_classifier_forward.9} parent=31 // pred_fallthru
        _
    $region32: #{clip_vision_classifier_forward.9} parent=5 // pred_fallthru
      _
    %p332 = scmp.le.s32.totalorder 2, %s9
    // Predicated region
    $region37: #{clip_vision_classifier_forward.9} parent=5 // pred_check
      %p333 = pneg %p332
    $region38: #{clip_vision_classifier_forward.9} parent=5 // pred_check_branch
      %335 = sbr.rel (%p333) target = $region40
    $region39: #{clip_vision_classifier_forward.9} parent=5 // pred_region
      %s336 = ssub.s32 %s9, 2
      // Predicated region
      $region41: #{clip_vision_classifier_forward.9} parent=39 // pred_check
        %p337 = pneg %p106
      $region42: #{clip_vision_classifier_forward.9} parent=39 // pred_check_branch
        %339 = sbr.rel (%p337) target = $region44
      $region43: #{clip_vision_classifier_forward.9} parent=39 // pred_region
        %p340 = scmp.lt.s32.totalorder %s15, 1
        %s341 = scalar_select %p340, %s15, 1
        %s342 = smul.addr %s341, 4
        %s343 = scalar_lea.vmem %s3, %s342
      $region44: #{clip_vision_classifier_forward.9} parent=39 // pred_fallthru
        _
    $region40: #{clip_vision_classifier_forward.9} parent=5 // pred_fallthru
      _
  $region6: #{clip_vision_classifier_forward.9} parent=0 // loop_footer
    %s13 = sadd.s32 1, %s9
  $region7: #{clip_vision_classifier_forward.9} parent=0 // loop_footer_branch
    %8 = sbr.rel target = $region3
  $region8: #{clip_vision_classifier_forward.9} parent=0 // loop_exit
    _

// kernel: clip_vision_classifier_forward.11
$region0: #{clip_vision_classifier_forward.11}
  #allocation0 [shape = 'u32[]', space=smem, size = 0x4, offset = 0x4, fixed_abs, tag = 'smem constant byte address 0x4 - core index']
  #allocation1 [shape = 'u32[144,128]{1,0:T(1,128)}', space=vmem, size = 0x12000, scoped, tag = 'internal scratch']
  %s0 = inlined_call_operand.vmem [shape: f32[2,5,32], index: 0, kind: input, shape index: {}]
  %s1 = inlined_call_operand.vmem [shape: f32[1,32], index: 1, kind: input, shape index: {}]
  %s2 = inlined_call_operand.vmem [shape: f32[1,32], index: 2, kind: input, shape index: {}]
  %s3 = inlined_call_operand.vmem [shape: bf16[32,96], index: 3, kind: input, shape index: {}]
  %s4 = inlined_call_operand.vmem [shape: f32[1,96], index: 4, kind: input, shape index: {}]
  %s5 = inlined_call_operand.vmem [shape: bf16[2,5,96], index: 5, kind: output, shape index: {}]
  %s6 = sld [smem:[#allocation0]]
  $region53: #{clip_vision_classifier_forward.11} parent=0
    _
  %s8 = ssub.s32 1, %s6
  %s9 = scalar_select 0, %s8, %s6
  loop: start=0, step=1, limit=4
  $region2: #{clip_vision_classifier_forward.11} parent=0 // loop_pre_header
    _
  $region3: #{clip_vision_classifier_forward.11} parent=0 // loop_header
    %s11 = sphi 0, %s15
    %p12 = scmp.ge.s32.totalorder %s11, 4
    %s21 = sphi 0, %s23
    %s24 = sphi 0, %s21
    %s25 = sphi 0, %s24
    %s41 = sphi 0, %s25
    %s45 = sphi 0, %s45
    %s47 = sphi 0, %s45
    %s48 = sphi 0, %s47
    %s62 = sphi 0, %s48
    %s66 = sphi 0, %s66
    %s68 = sphi 0, %s66
    %s69 = sphi 0, %s68
    %s83 = sphi 0, %s69
    %s87 = sphi 0, %s87
    %s89 = sphi 0, %s87
    %s90 = sphi 0, %s89
    %s104 = sphi 0, %s90
    %s108 = sphi 0, %s108
    %s110 = sphi 0, %s108
    %s111 = sphi 0, %s110
    %s125 = sphi 0, %s111
    %s131 = sphi 0, %s133
    %s134 = sphi 0, %s131
    %s135 = sphi 0, %s134
    %s151 = sphi 0, %s135
  $region4: #{clip_vision_classifier_forward.11} parent=0 // loop_header_branch
    %14 = sbr.rel (%p12) target = $region8
  $region5: #{clip_vision_classifier_forward.11} parent=0 // loop_body
    %s16 = ssub.s32 %s11, 1
    %s17 = ssub.s32 %s11, 2
    %s18 = sadd.s32 %s11, 1
    %s19 = ssub.s32 %s11, %s18
    %p20 = scmp.eq.s32.totalorder %s19, 0
    %s22 = sadd.s32 %s21, 1
    %s23 = scalar_select %p20, %s21, %s22
    %p26 = pneg %p20
    %p27 = scmp.eq.s32.totalorder %s11, 1
    %p28 = por %p26, %p27
    %p29 = scmp.ne.s32.totalorder %s21, %s24
    %p30 = scmp.eq.s32.totalorder %s11, 0
    %p31 = por %p29, %p30
    %p32 = scmp.ne.s32.totalorder %s21, %s24
    %p33 = scmp.eq.s32.totalorder %s16, 1
    %p34 = por %p32, %p33
    %p35 = scmp.ne.s32.totalorder %s24, %s25
    %p36 = scmp.eq.s32.totalorder %s16, 0
    %p37 = por %p35, %p36
    %p38 = scmp.ne.s32.totalorder %s24, %s25
    %p39 = scmp.eq.s32.totalorder %s17, 1
    %p40 = por %p38, %p39
    %p42 = scmp.ne.s32.totalorder %s25, %s41
    %p43 = scmp.eq.s32.totalorder %s17, 0
    %p44 = por %p42, %p43
    %s46 = sadd.s32 %s45, 1
    %p49 = scmp.eq.s32.totalorder %s11, 1
    %p50 = scmp.ne.s32.totalorder %s45, %s47
    %p51 = scmp.eq.s32.totalorder %s11, 0
    %p52 = por %p50, %p51
    %p53 = scmp.ne.s32.totalorder %s45, %s47
    %p54 = scmp.eq.s32.totalorder %s16, 1
    %p55 = por %p53, %p54
    %p56 = scmp.ne.s32.totalorder %s47, %s48
    %p57 = scmp.eq.s32.totalorder %s16, 0
    %p58 = por %p56, %p57
    %p59 = scmp.ne.s32.totalorder %s47, %s48
    %p60 = scmp.eq.s32.totalorder %s17, 1
    %p61 = por %p59, %p60
    %p63 = scmp.ne.s32.totalorder %s48, %s62
    %p64 = scmp.eq.s32.totalorder %s17, 0
    %p65 = por %p63, %p64
    %s67 = sadd.s32 %s66, 1
    %p70 = scmp.eq.s32.totalorder %s11, 1
    %p71 = scmp.ne.s32.totalorder %s66, %s68
    %p72 = scmp.eq.s32.totalorder %s11, 0
    %p73 = por %p71, %p72
    %p74 = scmp.ne.s32.totalorder %s66, %s68
    %p75 = scmp.eq.s32.totalorder %s16, 1
    %p76 = por %p74, %p75
    %p77 = scmp.ne.s32.totalorder %s68, %s69
    %p78 = scmp.eq.s32.totalorder %s16, 0
    %p79 = por %p77, %p78
    %p80 = scmp.ne.s32.totalorder %s68, %s69
    %p81 = scmp.eq.s32.totalorder %s17, 1
    %p82 = por %p80, %p81
    %p84 = scmp.ne.s32.totalorder %s69, %s83
    %p85 = scmp.eq.s32.totalorder %s17, 0
    %p86 = por %p84, %p85
    %s88 = sadd.s32 %s87, 1
    %p91 = scmp.eq.s32.totalorder %s11, 1
    %p92 = scmp.ne.s32.totalorder %s87, %s89
    %p93 = scmp.eq.s32.totalorder %s11, 0
    %p94 = por %p92, %p93
    %p95 = scmp.ne.s32.totalorder %s87, %s89
    %p96 = scmp.eq.s32.totalorder %s16, 1
    %p97 = por %p95, %p96
    %p98 = scmp.ne.s32.totalorder %s89, %s90
    %p99 = scmp.eq.s32.totalorder %s16, 0
    %p100 = por %p98, %p99
    %p101 = scmp.ne.s32.totalorder %s89, %s90
    %p102 = scmp.eq.s32.totalorder %s17, 1
    %p103 = por %p101, %p102
    %p105 = scmp.ne.s32.totalorder %s90, %s104
    %p106 = scmp.eq.s32.totalorder %s17, 0
    %p107 = por %p105, %p106
    %s109 = sadd.s32 %s108, 1
    %p112 = scmp.eq.s32.totalorder %s11, 1
    %p113 = scmp.ne.s32.totalorder %s108, %s110
    %p114 = scmp.eq.s32.totalorder %s11, 0
    %p115 = por %p113, %p114
    %p116 = scmp.ne.s32.totalorder %s108, %s110
    %p117 = scmp.eq.s32.totalorder %s16, 1
    %p118 = por %p116, %p117
    %p119 = scmp.ne.s32.totalorder %s110, %s111
    %p120 = scmp.eq.s32.totalorder %s16, 0
    %p121 = por %p119, %p120
    %p122 = scmp.ne.s32.totalorder %s110, %s111
    %p123 = scmp.eq.s32.totalorder %s17, 1
    %p124 = por %p122, %p123
    %p126 = scmp.ne.s32.totalorder %s111, %s125
    %p127 = scmp.eq.s32.totalorder %s17, 0
    %p128 = por %p126, %p127
    %s129 = ssub.s32 %s11, %s18
    %p130 = scmp.eq.s32.totalorder %s129, 0
    %s132 = sadd.s32 %s131, 1
    %s133 = scalar_select %p130, %s131, %s132
    %p136 = pneg %p130
    %p137 = scmp.eq.s32.totalorder %s11, 1
    %p138 = por %p136, %p137
    %p139 = scmp.ne.s32.totalorder %s131, %s134
    %p140 = scmp.eq.s32.totalorder %s11, 0
    %p141 = por %p139, %p140
    %p142 = scmp.ne.s32.totalorder %s131, %s134
    %p143 = scmp.eq.s32.totalorder %s16, 1
    %p144 = por %p142, %p143
    %p145 = scmp.ne.s32.totalorder %s134, %s135
    %p146 = scmp.eq.s32.totalorder %s16, 0
    %p147 = por %p145, %p146
    %p148 = scmp.ne.s32.totalorder %s134, %s135
    %p149 = scmp.eq.s32.totalorder %s17, 1
    %p150 = por %p148, %p149
    %p152 = scmp.ne.s32.totalorder %s135, %s151
    %p153 = scmp.eq.s32.totalorder %s17, 0
    %p154 = por %p152, %p153
    %p155 = scmp.le.s32.totalorder 1, %s11
    %p156 = scmp.lt.s32.totalorder %s11, 3
    %p157 = pnand %p155, %p156
    %p158 = pneg %p157
    // Predicated region
    $region9: #{clip_vision_classifier_forward.11} parent=5 // pred_check
      _
    $region10: #{clip_vision_classifier_forward.11} parent=5 // pred_check_branch
      %160 = sbr.rel (%p157) target = $region12
    $region11: #{clip_vision_classifier_forward.11} parent=5 // pred_region
      %s161 = ssub.s32 %s11, 1
      // Predicated region
      $region13: #{clip_vision_classifier_forward.11} parent=11 // pred_check
        %p162 = pneg %p58
      $region14: #{clip_vision_classifier_forward.11} parent=11 // pred_check_branch
        %164 = sbr.rel (%p162) target = $region16
      $region15: #{clip_vision_classifier_forward.11} parent=11 // pred_region
        _
      $region16: #{clip_vision_classifier_forward.11} parent=11 // pred_fallthru
        _
      // Predicated region
      $region17: #{clip_vision_classifier_forward.11} parent=11 // pred_check
        %p165 = pneg %p79
      $region18: #{clip_vision_classifier_forward.11} parent=11 // pred_check_branch
        %167 = sbr.rel (%p165) target = $region20
      $region19: #{clip_vision_classifier_forward.11} parent=11 // pred_region
        _
      $region20: #{clip_vision_classifier_forward.11} parent=11 // pred_fallthru
        _
      // Predicated region
      $region21: #{clip_vision_classifier_forward.11} parent=11 // pred_check
        %p168 = pneg %p100
      $region22: #{clip_vision_classifier_forward.11} parent=11 // pred_check_branch
        %170 = sbr.rel (%p168) target = $region24
      $region23: #{clip_vision_classifier_forward.11} parent=11 // pred_region
        _
      $region24: #{clip_vision_classifier_forward.11} parent=11 // pred_fallthru
        _
      // Predicated region
      $region25: #{clip_vision_classifier_forward.11} parent=11 // pred_check
        %p171 = pneg %p121
      $region26: #{clip_vision_classifier_forward.11} parent=11 // pred_check_branch
        %173 = sbr.rel (%p171) target = $region28
      $region27: #{clip_vision_classifier_forward.11} parent=11 // pred_region
        _
      $region28: #{clip_vision_classifier_forward.11} parent=11 // pred_fallthru
        _
    $region12: #{clip_vision_classifier_forward.11} parent=5 // pred_fallthru
      _
    %p174 = scmp.lt.s32.totalorder %s11, 2
    // Predicated region
    $region29: #{clip_vision_classifier_forward.11} parent=5 // pred_check
      %p175 = pneg %p174
    $region30: #{clip_vision_classifier_forward.11} parent=5 // pred_check_branch
      %177 = sbr.rel (%p175) target = $region32
    $region31: #{clip_vision_classifier_forward.11} parent=5 // pred_region
      // Predicated region
      $region33: #{clip_vision_classifier_forward.11} parent=31 // pred_check
        %p178 = pneg %p31
      $region34: #{clip_vision_classifier_forward.11} parent=31 // pred_check_branch
        %180 = sbr.rel (%p178) target = $region36
      $region35: #{clip_vision_classifier_forward.11} parent=31 // pred_region
        %p181 = scmp.lt.s32.totalorder %s11, 1
        %s182 = scalar_select %p181, %s11, 1
        %s183 = smul.addr %s182, 8
        %s184 = scalar_lea.vmem %s0, %s183
      $region36: #{clip_vision_classifier_forward.11} parent=31 // pred_fallthru
        _
    $region32: #{clip_vision_classifier_forward.11} parent=5 // pred_fallthru
      _
    %p185 = scmp.le.s32.totalorder 1, %s11
    %p186 = scmp.lt.s32.totalorder %s11, 3
    %p187 = pnand %p185, %p186
    %p188 = pneg %p187
    // Predicated region
    $region37: #{clip_vision_classifier_forward.11} parent=5 // pred_check
      _
    $region38: #{clip_vision_classifier_forward.11} parent=5 // pred_check_branch
      %190 = sbr.rel (%p187) target = $region40
    $region39: #{clip_vision_classifier_forward.11} parent=5 // pred_region
      %s191 = ssub.s32 %s11, 1
      %p192 = scmp.lt.s32.totalorder %s16, 1
      %s193 = scalar_select %p192, %s16, 1
      %s194 = smul.addr %s193, 8
      %s195 = scalar_lea.vmem %s0, %s194
      %p196 = pneg %p37
      %p197 = pneg %p34
      %p198 = pneg %p58
      %p199 = pneg %p55
      %p200 = pneg %p79
      %p201 = pneg %p76
      %p202 = pneg %p100
      %p203 = pneg %p97
      %p204 = pneg %p121
      %p205 = pneg %p118
      %p206 = pneg %p147
      %p207 = pneg %p144
      %p208 = scmp.lt.s32.totalorder %s16, 1
      %s209 = scalar_select %p208, %s16, 1
      %s210 = smul.addr %s209, 4
      %s211 = scalar_lea.vmem %s5, %s210
      %p212 = scmp.lt.s32.totalorder %s16, 1
      %s213 = scalar_select %p212, %s16, 1
      %s214 = smul.addr %s213, 8
      %s215 = scalar_lea.vmem %s0, %s214
      %p216 = scmp.lt.s32.totalorder %s16, 1
      %s217 = scalar_select %p216, %s16, 1
      %s218 = smul.addr %s217, 4
      %s219 = scalar_lea.vmem %s5, %s218
      %v221 = vld [vmem:[%s215] sm:$0x1f]
      %v222 = vld [vmem:[%s1] sm:$0x1]
      %v223 = vld [vmem:[%s2] sm:$0x1]
      %vm224 = vcmask 258048
      %v225 = vsel %vm224, %v221, 0.0
      %226 = vadd.xlane.f32.xlu0 %v225
      %v227 = vpop.xlane.xlu0 %226
      %v228 = vrcp.pop 32.0
      %v229 = vmul.f32 %v227, %v228
      %v230 = vsub.f32 %v221, %v229
      %v231 = vmul.f32 %v230, %v230
      %v232 = vsel %vm224, %v231, 0.0
      %233 = vadd.xlane.f32.xlu0 %v232
      %v234 = vpop.xlane.xlu0 %233
      %v235 = vmul.f32 %v234, %v228
      %v236 = vadd.f32 %v235, 1e-05
      %v237 = vrsqrt.pop %v236
      %v238 = vmul.f32 %v230, %v237
      %v240 = vlaneseq
      %v241 = vshrl.u32 %v240, 7
      %v242 = vsub.s32 0, %v241
      %v243 = vrot.slane %v222, %v242
      %v245 = vmul.f32 %v238, %v243
      %v247 = vlaneseq
      %v248 = vshrl.u32 %v247, 7
      %v249 = vsub.s32 0, %v248
      %v250 = vrot.slane %v223, %v249
      %v252 = vadd.f32 %v245, %v250
      %v253 = vpack.c.bf16 %v252, %v252
      %v254 = vld [vmem:[%s3] sm:$0xf]
      %v255 = vld [vmem:[%s3 + $0x4] sm:$0xf]
      %v256 = vld [vmem:[%s3 + $0x8] sm:$0xf]
      %v257 = vld [vmem:[%s3 + $0xc] sm:$0xf]
      %v258 = vld [vmem:[%s4] sm:$0x1]
      %v260 = vlaneseq
      %v261 = vshrl.u32 %v260, 7
      %v262 = vsub.s32 0, %v261
      %v263 = vrot.slane %v258, %v262
      %v269 = vunpack.c.l.b16 %v254
      %v270 = vunpack.c.l.b16 %v255
      %v271 = vunpack.c.l.b16 %v256
      %v272 = vunpack.c.l.b16 %v257
      %v273 = vpack.c.b16 %v270, %v269
      %v274 = vpack.c.b16 %v272, %v271
      %vm277 = vcmask 261120
      %v279 = vsel %vm277, %v253, 0
      %281 = vmatprep.subr.bf16.mxu0 0
      %282 = vmatpush1.bf16.msra.mxu0 %v273
      %283 = vmatprep.subr.bf16.mxu0 0
      %284 = vmatpush1.bf16.msra.mxu0 %v274
      %285 = vmatprep.subr.bf16.mxu0 0
      %286 = vmatpush1.bf16.msra.mxu0 0
      %287 = vmatprep.subr.bf16.mxu0 0
      %288 = vmatpush1.bf16.msra.mxu0 0
      %289 = vmatprep.subr.bf16.mxu0 0
      %290 = vmatpush1.bf16.msra.mxu0 0
      %291 = vmatprep.subr.bf16.mxu0 0
      %292 = vmatpush1.bf16.msra.mxu0 0
      %293 = vmatprep.subr.bf16.mxu0 0
      %294 = vmatpush1.bf16.msra.mxu0 0
      %295 = vmatprep.subr.bf16.mxu0 0
      %296 = vmatpush1.bf16.msra.mxu0 0
      %297 = vmatprep.subr.bf16.mxu0 0
      %298 = vmatpush1.bf16.msra.mxu0 0
      %299 = vmatprep.subr.bf16.mxu0 0
      %300 = vmatpush1.bf16.msra.mxu0 0
      %301 = vmatprep.subr.bf16.mxu0 0
      %302 = vmatpush1.bf16.msra.mxu0 0
      %303 = vmatprep.subr.bf16.mxu0 0
      %304 = vmatpush1.bf16.msra.mxu0 0
      %305 = vmatprep.subr.bf16.mxu0 0
      %306 = vmatpush1.bf16.msra.mxu0 0
      %307 = vmatprep.subr.bf16.mxu0 0
      %308 = vmatpush1.bf16.msra.mxu0 0
      %309 = vmatprep.subr.bf16.mxu0 0
      %310 = vmatpush1.bf16.msra.mxu0 0
      %311 = vmatprep.subr.bf16.mxu0 0
      %312 = vmatpush1.bf16.msra.mxu0 0
      %313 = vmatprep.mubr.bf16.mxu0 0
      %314 = vmatmul.mubr.bf16.gmra.mrb[0].mxu0 %v279
      %v315 = vpop.f32.mrb[0].mxu0
      %v316 = vadd.f32 %v263, %v315
      %v317 = vpop.f32.mrb[0].mxu0
      %v318 = vpop.f32.mrb[0].mxu0
      %v319 = vpop.f32.mrb[0].mxu0
      %320 = vdwg.mxu0
      %v321 = vpack.c.bf16 %v316, %v316
      %vm322 = vcmask 780288
      %vm323 = vsmask.f32 2304
      %vm324 = vmand %vm322, %vm323
      %v325 = vld [vmem:[%s219] sm:$0x7]
      %v326 = vsel %vm324, %v321, %v325
      %327 = vst [vmem:[%s219] sm:$0x7] %v326
      %p328 = scmp.lt.s32.totalorder %s16, 1
      %s329 = scalar_select %p328, %s16, 1
      %s330 = smul.addr %s329, 4
      %s331 = scalar_lea.vmem %s5, %s330
      // Predicated region
      $region41: #{clip_vision_classifier_forward.11} parent=39 // pred_check
        %p332 = pneg %p144
      $region42: #{clip_vision_classifier_forward.11} parent=39 // pred_check_branch
        %334 = sbr.rel (%p332) target = $region44
      $region43: #{clip_vision_classifier_forward.11} parent=39 // pred_region
        _
      $region44: #{clip_vision_classifier_forward.11} parent=39 // pred_fallthru
        _
    $region40: #{clip_vision_classifier_forward.11} parent=5 // pred_fallthru
      _
    %p335 = scmp.le.s32.totalorder 2, %s11
    // Predicated region
    $region45: #{clip_vision_classifier_forward.11} parent=5 // pred_check
      %p336 = pneg %p335
    $region46: #{clip_vision_classifier_forward.11} parent=5 // pred_check_branch
      %338 = sbr.rel (%p336) target = $region48
    $region47: #{clip_vision_classifier_forward.11} parent=5 // pred_region
      %s339 = ssub.s32 %s11, 2
      // Predicated region
      $region49: #{clip_vision_classifier_forward.11} parent=47 // pred_check
        %p340 = pneg %p150
      $region50: #{clip_vision_classifier_forward.11} parent=47 // pred_check_branch
        %342 = sbr.rel (%p340) target = $region52
      $region51: #{clip_vision_classifier_forward.11} parent=47 // pred_region
        %p343 = scmp.lt.s32.totalorder %s17, 1
        %s344 = scalar_select %p343, %s17, 1
        %s345 = smul.addr %s344, 4
        %s346 = scalar_lea.vmem %s5, %s345
      $region52: #{clip_vision_classifier_forward.11} parent=47 // pred_fallthru
        _
    $region48: #{clip_vision_classifier_forward.11} parent=5 // pred_fallthru
      _
  $region6: #{clip_vision_classifier_forward.11} parent=0 // loop_footer
    %s15 = sadd.s32 1, %s11
  $region7: #{clip_vision_classifier_forward.11} parent=0 // loop_footer_branch
    %10 = sbr.rel target = $region3
  $region8: #{clip_vision_classifier_forward.11} parent=0 // loop_exit
    _

// kernel: clip_vision_classifier_forward.12
$region0: #{clip_vision_classifier_forward.12}
  #allocation0 [shape = 'u32[]', space=smem, size = 0x4, offset = 0x4, fixed_abs, tag = 'smem constant byte address 0x4 - core index']
  #allocation1 [shape = 'u32[144,128]{1,0:T(1,128)}', space=vmem, size = 0x12000, scoped, tag = 'internal scratch']
  %s0 = inlined_call_operand.vmem [shape: bf16[2,5,96], index: 0, kind: input, shape index: {}]
  %s1 = inlined_call_operand.vmem [shape: bf16[32,32], index: 1, kind: input, shape index: {}]
  %s2 = inlined_call_operand.vmem [shape: f32[1,32], index: 2, kind: input, shape index: {}]
  %s3 = inlined_call_operand.vmem [shape: f32[2,5,32], index: 3, kind: input, shape index: {}]
  %s4 = inlined_call_operand.vmem [shape: f32[2,5,32], index: 4, kind: output, shape index: {}]
  %s5 = sld [smem:[#allocation0]]
  $region49: #{clip_vision_classifier_forward.12} parent=0
    _
  %s7 = ssub.s32 1, %s5
  %s8 = scalar_select 0, %s7, %s5
  loop: start=0, step=1, limit=4
  $region2: #{clip_vision_classifier_forward.12} parent=0 // loop_pre_header
    _
  $region3: #{clip_vision_classifier_forward.12} parent=0 // loop_header
    %s10 = sphi 0, %s14
    %p11 = scmp.ge.s32.totalorder %s10, 4
    %s20 = sphi 0, %s22
    %s23 = sphi 0, %s20
    %s24 = sphi 0, %s23
    %s40 = sphi 0, %s24
    %s44 = sphi 0, %s44
    %s46 = sphi 0, %s44
    %s47 = sphi 0, %s46
    %s61 = sphi 0, %s47
    %s65 = sphi 0, %s65
    %s67 = sphi 0, %s65
    %s68 = sphi 0, %s67
    %s82 = sphi 0, %s68
    %s88 = sphi 0, %s90
    %s91 = sphi 0, %s88
    %s92 = sphi 0, %s91
    %s108 = sphi 0, %s92
    %s114 = sphi 0, %s116
    %s117 = sphi 0, %s114
    %s118 = sphi 0, %s117
    %s134 = sphi 0, %s118
  $region4: #{clip_vision_classifier_forward.12} parent=0 // loop_header_branch
    %13 = sbr.rel (%p11) target = $region8
  $region5: #{clip_vision_classifier_forward.12} parent=0 // loop_body
    %s15 = ssub.s32 %s10, 1
    %s16 = ssub.s32 %s10, 2
    %s17 = sadd.s32 %s10, 1
    %s18 = ssub.s32 %s10, %s17
    %p19 = scmp.eq.s32.totalorder %s18, 0
    %s21 = sadd.s32 %s20, 1
    %s22 = scalar_select %p19, %s20, %s21
    %p25 = pneg %p19
    %p26 = scmp.eq.s32.totalorder %s10, 1
    %p27 = por %p25, %p26
    %p28 = scmp.ne.s32.totalorder %s20, %s23
    %p29 = scmp.eq.s32.totalorder %s10, 0
    %p30 = por %p28, %p29
    %p31 = scmp.ne.s32.totalorder %s20, %s23
    %p32 = scmp.eq.s32.totalorder %s15, 1
    %p33 = por %p31, %p32
    %p34 = scmp.ne.s32.totalorder %s23, %s24
    %p35 = scmp.eq.s32.totalorder %s15, 0
    %p36 = por %p34, %p35
    %p37 = scmp.ne.s32.totalorder %s23, %s24
    %p38 = scmp.eq.s32.totalorder %s16, 1
    %p39 = por %p37, %p38
    %p41 = scmp.ne.s32.totalorder %s24, %s40
    %p42 = scmp.eq.s32.totalorder %s16, 0
    %p43 = por %p41, %p42
    %s45 = sadd.s32 %s44, 1
    %p48 = scmp.eq.s32.totalorder %s10, 1
    %p49 = scmp.ne.s32.totalorder %s44, %s46
    %p50 = scmp.eq.s32.totalorder %s10, 0
    %p51 = por %p49, %p50
    %p52 = scmp.ne.s32.totalorder %s44, %s46
    %p53 = scmp.eq.s32.totalorder %s15, 1
    %p54 = por %p52, %p53
    %p55 = scmp.ne.s32.totalorder %s46, %s47
    %p56 = scmp.eq.s32.totalorder %s15, 0
    %p57 = por %p55, %p56
    %p58 = scmp.ne.s32.totalorder %s46, %s47
    %p59 = scmp.eq.s32.totalorder %s16, 1
    %p60 = por %p58, %p59
    %p62 = scmp.ne.s32.totalorder %s47, %s61
    %p63 = scmp.eq.s32.totalorder %s16, 0
    %p64 = por %p62, %p63
    %s66 = sadd.s32 %s65, 1
    %p69 = scmp.eq.s32.totalorder %s10, 1
    %p70 = scmp.ne.s32.totalorder %s65, %s67
    %p71 = scmp.eq.s32.totalorder %s10, 0
    %p72 = por %p70, %p71
    %p73 = scmp.ne.s32.totalorder %s65, %s67
    %p74 = scmp.eq.s32.totalorder %s15, 1
    %p75 = por %p73, %p74
    %p76 = scmp.ne.s32.totalorder %s67, %s68
    %p77 = scmp.eq.s32.totalorder %s15, 0
    %p78 = por %p76, %p77
    %p79 = scmp.ne.s32.totalorder %s67, %s68
    %p80 = scmp.eq.s32.totalorder %s16, 1
    %p81 = por %p79, %p80
    %p83 = scmp.ne.s32.totalorder %s68, %s82
    %p84 = scmp.eq.s32.totalorder %s16, 0
    %p85 = por %p83, %p84
    %s86 = ssub.s32 %s10, %s17
    %p87 = scmp.eq.s32.totalorder %s86, 0
    %s89 = sadd.s32 %s88, 1
    %s90 = scalar_select %p87, %s88, %s89
    %p93 = pneg %p87
    %p94 = scmp.eq.s32.totalorder %s10, 1
    %p95 = por %p93, %p94
    %p96 = scmp.ne.s32.totalorder %s88, %s91
    %p97 = scmp.eq.s32.totalorder %s10, 0
    %p98 = por %p96, %p97
    %p99 = scmp.ne.s32.totalorder %s88, %s91
    %p100 = scmp.eq.s32.totalorder %s15, 1
    %p101 = por %p99, %p100
    %p102 = scmp.ne.s32.totalorder %s91, %s92
    %p103 = scmp.eq.s32.totalorder %s15, 0
    %p104 = por %p102, %p103
    %p105 = scmp.ne.s32.totalorder %s91, %s92
    %p106 = scmp.eq.s32.totalorder %s16, 1
    %p107 = por %p105, %p106
    %p109 = scmp.ne.s32.totalorder %s92, %s108
    %p110 = scmp.eq.s32.totalorder %s16, 0
    %p111 = por %p109, %p110
    %s112 = ssub.s32 %s10, %s17
    %p113 = scmp.eq.s32.totalorder %s112, 0
    %s115 = sadd.s32 %s114, 1
    %s116 = scalar_select %p113, %s114, %s115
    %p119 = pneg %p113
    %p120 = scmp.eq.s32.totalorder %s10, 1
    %p121 = por %p119, %p120
    %p122 = scmp.ne.s32.totalorder %s114, %s117
    %p123 = scmp.eq.s32.totalorder %s10, 0
    %p124 = por %p122, %p123
    %p125 = scmp.ne.s32.totalorder %s114, %s117
    %p126 = scmp.eq.s32.totalorder %s15, 1
    %p127 = por %p125, %p126
    %p128 = scmp.ne.s32.totalorder %s117, %s118
    %p129 = scmp.eq.s32.totalorder %s15, 0
    %p130 = por %p128, %p129
    %p131 = scmp.ne.s32.totalorder %s117, %s118
    %p132 = scmp.eq.s32.totalorder %s16, 1
    %p133 = por %p131, %p132
    %p135 = scmp.ne.s32.totalorder %s118, %s134
    %p136 = scmp.eq.s32.totalorder %s16, 0
    %p137 = por %p135, %p136
    %p138 = scmp.le.s32.totalorder 1, %s10
    %p139 = scmp.lt.s32.totalorder %s10, 3
    %p140 = pnand %p138, %p139
    %p141 = pneg %p140
    // Predicated region
    $region9: #{clip_vision_classifier_forward.12} parent=5 // pred_check
      _
    $region10: #{clip_vision_classifier_forward.12} parent=5 // pred_check_branch
      %143 = sbr.rel (%p140) target = $region12
    $region11: #{clip_vision_classifier_forward.12} parent=5 // pred_region
      %s144 = ssub.s32 %s10, 1
      // Predicated region
      $region13: #{clip_vision_classifier_forward.12} parent=11 // pred_check
        %p145 = pneg %p57
      $region14: #{clip_vision_classifier_forward.12} parent=11 // pred_check_branch
        %147 = sbr.rel (%p145) target = $region16
      $region15: #{clip_vision_classifier_forward.12} parent=11 // pred_region
        _
      $region16: #{clip_vision_classifier_forward.12} parent=11 // pred_fallthru
        _
      // Predicated region
      $region17: #{clip_vision_classifier_forward.12} parent=11 // pred_check
        %p148 = pneg %p78
      $region18: #{clip_vision_classifier_forward.12} parent=11 // pred_check_branch
        %150 = sbr.rel (%p148) target = $region20
      $region19: #{clip_vision_classifier_forward.12} parent=11 // pred_region
        _
      $region20: #{clip_vision_classifier_forward.12} parent=11 // pred_fallthru
        _
    $region12: #{clip_vision_classifier_forward.12} parent=5 // pred_fallthru
      _
    %p151 = scmp.lt.s32.totalorder %s10, 2
    // Predicated region
    $region21: #{clip_vision_classifier_forward.12} parent=5 // pred_check
      %p152 = pneg %p151
    $region22: #{clip_vision_classifier_forward.12} parent=5 // pred_check_branch
      %154 = sbr.rel (%p152) target = $region24
    $region23: #{clip_vision_classifier_forward.12} parent=5 // pred_region
      // Predicated region
      $region25: #{clip_vision_classifier_forward.12} parent=23 // pred_check
        %p155 = pneg %p30
      $region26: #{clip_vision_classifier_forward.12} parent=23 // pred_check_branch
        %157 = sbr.rel (%p155) target = $region28
      $region27: #{clip_vision_classifier_forward.12} parent=23 // pred_region
        %p158 = scmp.lt.s32.totalorder %s10, 1
        %s159 = scalar_select %p158, %s10, 1
        %s160 = smul.addr %s159, 4
        %s161 = scalar_lea.vmem %s0, %s160
      $region28: #{clip_vision_classifier_forward.12} parent=23 // pred_fallthru
        _
      // Predicated region
      $region29: #{clip_vision_classifier_forward.12} parent=23 // pred_check
        %p162 = pneg %p98
      $region30: #{clip_vision_classifier_forward.12} parent=23 // pred_check_branch
        %164 = sbr.rel (%p162) target = $region32
      $region31: #{clip_vision_classifier_forward.12} parent=23 // pred_region
        %p165 = scmp.lt.s32.totalorder %s10, 1
        %s166 = scalar_select %p165, %s10, 1
        %s167 = smul.addr %s166, 8
        %s168 = scalar_lea.vmem %s3, %s167
      $region32: #{clip_vision_classifier_forward.12} parent=23 // pred_fallthru
        _
    $region24: #{clip_vision_classifier_forward.12} parent=5 // pred_fallthru
      _
    %p169 = scmp.le.s32.totalorder 1, %s10
    %p170 = scmp.lt.s32.totalorder %s10, 3
    %p171 = pnand %p169, %p170
    %p172 = pneg %p171
    // Predicated region
    $region33: #{clip_vision_classifier_forward.12} parent=5 // pred_check
      _
    $region34: #{clip_vision_classifier_forward.12} parent=5 // pred_check_branch
      %174 = sbr.rel (%p171) target = $region36
    $region35: #{clip_vision_classifier_forward.12} parent=5 // pred_region
      %s175 = ssub.s32 %s10, 1
      %p176 = scmp.lt.s32.totalorder %s15, 1
      %s177 = scalar_select %p176, %s15, 1
      %s178 = smul.addr %s177, 4
      %s179 = scalar_lea.vmem %s0, %s178
      %p180 = pneg %p36
      %p181 = pneg %p33
      %p182 = pneg %p57
      %p183 = pneg %p54
      %p184 = pneg %p78
      %p185 = pneg %p75
      %p186 = scmp.lt.s32.totalorder %s15, 1
      %s187 = scalar_select %p186, %s15, 1
      %s188 = smul.addr %s187, 8
      %s189 = scalar_lea.vmem %s3, %s188
      %p190 = pneg %p104
      %p191 = pneg %p101
      %p192 = pneg %p130
      %p193 = pneg %p127
      %p194 = scmp.lt.s32.totalorder %s15, 1
      %s195 = scalar_select %p194, %s15, 1
      %s196 = smul.addr %s195, 8
      %s197 = scalar_lea.vmem %s4, %s196
      %p198 = scmp.lt.s32.totalorder %s15, 1
      %s199 = scalar_select %p198, %s15, 1
      %s200 = smul.addr %s199, 4
      %s201 = scalar_lea.vmem %s0, %s200
      %p202 = scmp.lt.s32.totalorder %s15, 1
      %s203 = scalar_select %p202, %s15, 1
      %s204 = smul.addr %s203, 8
      %s205 = scalar_lea.vmem %s3, %s204
      %p206 = scmp.lt.s32.totalorder %s15, 1
      %s207 = scalar_select %p206, %s15, 1
      %s208 = smul.addr %s207, 8
      %s209 = scalar_lea.vmem %s4, %s208
      %v211 = vld [vmem:[%s201] sm:$0x7]
      %v212 = vld [vmem:[%s1] sm:$0xf]
      %v213 = vld [vmem:[%s1 + $0x4] sm:$0xf]
      %v214 = vld [vmem:[%s1 + $0x8] sm:$0xf]
      %v215 = vld [vmem:[%s1 + $0xc] sm:$0xf]
      %v216 = vld [vmem:[%s205] sm:$0x1f]
      %v217 = vld [vmem:[%s2] sm:$0x1]
      %v219 = vlaneseq
      %v220 = vshrl.u32 %v219, 7
      %v221 = vsub.s32 0, %v220
      %v222 = vrot.slane %v217, %v221
      %v224 = vadd.f32 %v216, %v222
      %v226 = vunpack.c.l.b16 %v211
      %v227 = vpack.c.b16 %v226, %v226
      %228 = vrot.lane.b32.xlu0 %v227, 96
      %v229 = vpop.permute.xlu0 %228
      %vm230 = vcmask 130048
      %v232 = vsel %vm230, %v211, 0
      %v235 = vsel %vm230, %v229, 0
      %237 = vmatprep.subr.bf16.mxu0 0
      %238 = vmatpush1.bf16.xpose.msra.mxu0 %v235
      %239 = vmatprep.subr.bf16.mxu0 0
      %240 = vmatpush1.bf16.xpose.msra.mxu0 0
      %241 = vmatprep.subr.bf16.mxu0 0
      %242 = vmatpush1.bf16.xpose.msra.mxu0 0
      %243 = vmatprep.subr.bf16.mxu0 0
      %244 = vmatpush1.bf16.xpose.msra.mxu0 0
      %245 = vmatprep.subr.bf16.mxu0 0
      %246 = vmatpush1.bf16.xpose.msra.mxu0 0
      %247 = vmatprep.subr.bf16.mxu0 0
      %248 = vmatpush1.bf16.xpose.msra.mxu0 0
      %249 = vmatprep.subr.bf16.mxu0 0
      %250 = vmatpush1.bf16.xpose.msra.mxu0 0
      %251 = vmatprep.subr.bf16.mxu0 0
      %252 = vmatpush1.bf16.xpose.msra.mxu0 0
      %253 = vmatprep.subr.bf16.mxu0 0
      %254 = vmatpush1.bf16.xpose.msra.mxu0 0
      %255 = vmatprep.subr.bf16.mxu0 0
      %256 = vmatpush1.bf16.xpose.msra.mxu0 0
      %257 = vmatprep.subr.bf16.mxu0 0
      %258 = vmatpush1.bf16.xpose.msra.mxu0 0
      %259 = vmatprep.subr.bf16.mxu0 0
      %260 = vmatpush1.bf16.xpose.msra.mxu0 0
      %261 = vmatprep.subr.bf16.mxu0 0
      %262 = vmatpush1.bf16.xpose.msra.mxu0 0
      %263 = vmatprep.subr.bf16.mxu0 0
      %264 = vmatpush1.bf16.xpose.msra.mxu0 0
      %265 = vmatprep.subr.bf16.mxu0 0
      %266 = vmatpush1.bf16.xpose.msra.mxu0 0
      %267 = vmatprep.subr.bf16.mxu0 0
      %268 = vmatpush1.bf16.xpose.msra.mxu0 0
      %269 = vmatprep.mubr.bf16.mxu0 0
      %270 = vmatmul.mubr.bf16.gmra.mrb[0].mxu0 %v232
      %v271 = vpop.f32.mrb[0].mxu0
      %v272 = vadd.f32 0.0, %v271
      %v273 = vpop.f32.mrb[0].mxu0
      %v274 = vpop.f32.mrb[0].mxu0
      %v275 = vpop.f32.mrb[0].mxu0
      %276 = vdwg.mxu0
      %v277 = vmul.f32 %v272, 0.25
      %vm278 = vcmask 36864
      %v279 = vsel %vm278, %v277, -inf
      %280 = vmax.xlane.f32.xlu0 %v279
      %v281 = vpop.xlane.xlu0 %280
      %v282 = vsub.f32 %v277, %v281
      %v283 = vmul.f32 %v282, 1.442695
      %v284 = vpow.pop %v283
      %v285 = vsel %vm278, %v284, 0.0
      %286 = vadd.xlane.f32.xlu0 %v285
      %v287 = vpop.xlane.xlu0 %286
      %v288 = vrcp.pop %v287
      %v289 = vmul.f32 %v284, %v288
      %v290 = vpack.c.bf16 %v289, %v289
      %291 = vrot.lane.b32.xlu0 %v227, 64
      %v292 = vpop.permute.xlu0 %291
      %vm293 = vcmask 39936
      %v295 = vsel %vm293, %v290, 0
      %vm297 = vcmask 1041408
      %vm298 = vcmask 1042432
      %v299 = vsel %vm297, 4294967295, 65535
      %v300 = vsel %vm298, %v299, 0
      %v302 = vand.u32 %v292, %v300
      %304 = vmatprep.subr.bf16.mxu0 0
      %305 = vmatpush1.bf16.msra.mxu0 %v302
      %306 = vmatprep.subr.bf16.mxu0 0
      %307 = vmatpush1.bf16.msra.mxu0 0
      %308 = vmatprep.subr.bf16.mxu0 0
      %309 = vmatpush1.bf16.msra.mxu0 0
      %310 = vmatprep.subr.bf16.mxu0 0
      %311 = vmatpush1.bf16.msra.mxu0 0
      %312 = vmatprep.subr.bf16.mxu0 0
      %313 = vmatpush1.bf16.msra.mxu0 0
      %314 = vmatprep.subr.bf16.mxu0 0
      %315 = vmatpush1.bf16.msra.mxu0 0
      %316 = vmatprep.subr.bf16.mxu0 0
      %317 = vmatpush1.bf16.msra.mxu0 0
      %318 = vmatprep.subr.bf16.mxu0 0
      %319 = vmatpush1.bf16.msra.mxu0 0
      %320 = vmatprep.subr.bf16.mxu0 0
      %321 = vmatpush1.bf16.msra.mxu0 0
      %322 = vmatprep.subr.bf16.mxu0 0
      %323 = vmatpush1.bf16.msra.mxu0 0
      %324 = vmatprep.subr.bf16.mxu0 0
      %325 = vmatpush1.bf16.msra.mxu0 0
      %326 = vmatprep.subr.bf16.mxu0 0
      %327 = vmatpush1.bf16.msra.mxu0 0
      %328 = vmatprep.subr.bf16.mxu0 0
      %329 = vmatpush1.bf16.msra.mxu0 0
      %330 = vmatprep.subr.bf16.mxu0 0
      %331 = vmatpush1.bf16.msra.mxu0 0
      %332 = vmatprep.subr.bf16.mxu0 0
      %333 = vmatpush1.bf16.msra.mxu0 0
      %334 = vmatprep.subr.bf16.mxu0 0
      %335 = vmatpush1.bf16.msra.mxu0 0
      %336 = vmatprep.mubr.bf16.mxu0 0
      %337 = vmatmul.mubr.bf16.gmra.mrb[0].mxu0 %v295
      %v338 = vpop.f32.mrb[0].mxu0
      %v339 = vadd.f32 0.0, %v338
      %v340 = vpop.f32.mrb[0].mxu0
      %v341 = vpop.f32.mrb[0].mxu0
      %v342 = vpop.f32.mrb[0].mxu0
      %343 = vdwg.mxu0
      %v344 = vpack.c.bf16 %v339, %v339
      %v347 = vunpack.c.l.b16 %v212
      %v348 = vunpack.c.l.b16 %v213
      %v349 = vpack.c.b16 %v348, %v347
      %v352 = vsel %vm230, %v344, 0
      %354 = vmatprep.subr.bf16.mxu0 0
      %355 = vmatpush1.bf16.msra.mxu0 %v349
      %356 = vmatprep.subr.bf16.mxu0 0
      %357 = vmatpush1.bf16.msra.mxu0 0
      %358 = vmatprep.subr.bf16.mxu0 0
      %359 = vmatpush1.bf16.msra.mxu0 0
      %360 = vmatprep.subr.bf16.mxu0 0
      %361 = vmatpush1.bf16.msra.mxu0 0
      %362 = vmatprep.subr.bf16.mxu0 0
      %363 = vmatpush1.bf16.msra.mxu0 0
      %364 = vmatprep.subr.bf16.mxu0 0
      %365 = vmatpush1.bf16.msra.mxu0 0
      %366 = vmatprep.subr.bf16.mxu0 0
      %367 = vmatpush1.bf16.msra.mxu0 0
      %368 = vmatprep.subr.bf16.mxu0 0
      %369 = vmatpush1.bf16.msra.mxu0 0
      %370 = vmatprep.subr.bf16.mxu0 0
      %371 = vmatpush1.bf16.msra.mxu0 0
      %372 = vmatprep.subr.bf16.mxu0 0
      %373 = vmatpush1.bf16.msra.mxu0 0
      %374 = vmatprep.subr.bf16.mxu0 0
      %375 = vmatpush1.bf16.msra.mxu0 0
      %376 = vmatprep.subr.bf16.mxu0 0
      %377 = vmatpush1.bf16.msra.mxu0 0
      %378 = vmatprep.subr.bf16.mxu0 0
      %379 = vmatpush1.bf16.msra.mxu0 0
      %380 = vmatprep.subr.bf16.mxu0 0
      %381 = vmatpush1.bf16.msra.mxu0 0
      %382 = vmatprep.subr.bf16.mxu0 0
      %383 = vmatpush1.bf16.msra.mxu0 0
      %384 = vmatprep.subr.bf16.mxu0 0
      %385 = vmatpush1.bf16.msra.mxu0 0
      %386 = vmatprep.mubr.bf16.mxu0 0
      %387 = vmatmul.mubr.bf16.gmra.mrb[0].mxu0 %v352
      %v388 = vpop.f32.mrb[0].mxu0
      %v389 = vadd.f32 0.0, %v388
      %v390 = vpop.f32.mrb[0].mxu0
      %v391 = vpop.f32.mrb[0].mxu0
      %v392 = vpop.f32.mrb[0].mxu0
      %393 = vdwg.mxu0
      %v394 = vadd.f32 %v224, %v389
      %395 = vrot.lane.b32.xlu0 %v227, 112
      %v396 = vpop.permute.xlu0 %395
      %397 = vrot.lane.b32.xlu0 %v227, 80
      %v398 = vpop.permute.xlu0 %397
      %v400 = vsel %vm230, %v396, 0
      %v403 = vsel %vm230, %v398, 0
      %405 = vmatprep.subr.bf16.mxu0 0
      %406 = vmatpush1.bf16.xpose.msra.mxu0 %v403
      %407 = vmatprep.subr.bf16.mxu0 0
      %408 = vmatpush1.bf16.xpose.msra.mxu0 0
      %409 = vmatprep.subr.bf16.mxu0 0
      %410 = vmatpush1.bf16.xpose.msra.mxu0 0
      %411 = vmatprep.subr.bf16.mxu0 0
      %412 = vmatpush1.bf16.xpose.msra.mxu0 0
      %413 = vmatprep.subr.bf16.mxu0 0
      %414 = vmatpush1.bf16.xpose.msra.mxu0 0
      %415 = vmatprep.subr.bf16.mxu0 0
      %416 = vmatpush1.bf16.xpose.msra.mxu0 0
      %417 = vmatprep.subr.bf16.mxu0 0
      %418 = vmatpush1.bf16.xpose.msra.mxu0 0
      %419 = vmatprep.subr.bf16.mxu0 0
      %420 = vmatpush1.bf16.xpose.msra.mxu0 0
      %421 = vmatprep.subr.bf16.mxu0 0
      %422 = vmatpush1.bf16.xpose.msra.mxu0 0
      %423 = vmatprep.subr.bf16.mxu0 0
      %424 = vmatpush1.bf16.xpose.msra.mxu0 0
      %425 = vmatprep.subr.bf16.mxu0 0
      %426 = vmatpush1.bf16.xpose.msra.mxu0 0
      %427 = vmatprep.subr.bf16.mxu0 0
      %428 = vmatpush1.bf16.xpose.msra.mxu0 0
      %429 = vmatprep.subr.bf16.mxu0 0
      %430 = vmatpush1.bf16.xpose.msra.mxu0 0
      %431 = vmatprep.subr.bf16.mxu0 0
      %432 = vmatpush1.bf16.xpose.msra.mxu0 0
      %433 = vmatprep.subr.bf16.mxu0 0
      %434 = vmatpush1.bf16.xpose.msra.mxu0 0
      %435 = vmatprep.subr.bf16.mxu0 0
      %436 = vmatpush1.bf16.xpose.msra.mxu0 0
      %437 = vmatprep.mubr.bf16.mxu0 0
      %438 = vmatmul.mubr.bf16.gmra.mrb[0].mxu0 %v400
      %v439 = vpop.f32.mrb[0].mxu0
      %v440 = vadd.f32 0.0, %v439
      %v441 = vpop.f32.mrb[0].mxu0
      %v442 = vpop.f32.mrb[0].mxu0
      %v443 = vpop.f32.mrb[0].mxu0
      %444 = vdwg.mxu0
      %v445 = vmul.f32 %v440, 0.25
      %v446 = vsel %vm278, %v445, -inf
      %447 = vmax.xlane.f32.xlu0 %v446
      %v448 = vpop.xlane.xlu0 %447
      %v449 = vsub.f32 %v445, %v448
      %v450 = vmul.f32 %v449, 1.442695
      %v451 = vpow.pop %v450
      %v452 = vsel %vm278, %v451, 0.0
      %453 = vadd.xlane.f32.xlu0 %v452
      %v454 = vpop.xlane.xlu0 %453
      %v455 = vrcp.pop %v454
      %v456 = vmul.f32 %v451, %v455
      %v457 = vpack.c.bf16 %v456, %v456
      %458 = vrot.lane.b32.xlu0 %v227, 48
      %v459 = vpop.permute.xlu0 %458
      %v461 = vsel %vm293, %v457, 0
      %v464 = vand.u32 %v459, %v300
      %466 = vmatprep.subr.bf16.mxu0 0
      %467 = vmatpush1.bf16.msra.mxu0 %v464
      %468 = vmatprep.subr.bf16.mxu0 0
      %469 = vmatpush1.bf16.msra.mxu0 0
      %470 = vmatprep.subr.bf16.mxu0 0
      %471 = vmatpush1.bf16.msra.mxu0 0
      %472 = vmatprep.subr.bf16.mxu0 0
      %473 = vmatpush1.bf16.msra.mxu0 0
      %474 = vmatprep.subr.bf16.mxu0 0
      %475 = vmatpush1.bf16.msra.mxu0 0
      %476 = vmatprep.subr.bf16.mxu0 0
      %477 = vmatpush1.bf16.msra.mxu0 0
      %478 = vmatprep.subr.bf16.mxu0 0
      %479 = vmatpush1.bf16.msra.mxu0 0
      %480 = vmatprep.subr.bf16.mxu0 0
      %481 = vmatpush1.bf16.msra.mxu0 0
      %482 = vmatprep.subr.bf16.mxu0 0
      %483 = vmatpush1.bf16.msra.mxu0 0
      %484 = vmatprep.subr.bf16.mxu0 0
      %485 = vmatpush1.bf16.msra.mxu0 0
      %486 = vmatprep.subr.bf16.mxu0 0
      %487 = vmatpush1.bf16.msra.mxu0 0
      %488 = vmatprep.subr.bf16.mxu0 0
      %489 = vmatpush1.bf16.msra.mxu0 0
      %490 = vmatprep.subr.bf16.mxu0 0
      %491 = vmatpush1.bf16.msra.mxu0 0
      %492 = vmatprep.subr.bf16.mxu0 0
      %493 = vmatpush1.bf16.msra.mxu0 0
      %494 = vmatprep.subr.bf16.mxu0 0
      %495 = vmatpush1.bf16.msra.mxu0 0
      %496 = vmatprep.subr.bf16.mxu0 0
      %497 = vmatpush1.bf16.msra.mxu0 0
      %498 = vmatprep.mubr.bf16.mxu0 0
      %499 = vmatmul.mubr.bf16.gmra.mrb[0].mxu0 %v461
      %v500 = vpop.f32.mrb[0].mxu0
      %v501 = vadd.f32 0.0, %v500
      %v502 = vpop.f32.mrb[0].mxu0
      %v503 = vpop.f32.mrb[0].mxu0
      %v504 = vpop.f32.mrb[0].mxu0
      %505 = vdwg.mxu0
      %v506 = vpack.c.bf16 %v501, %v501
      %v509 = vunpack.c.l.b16 %v214
      %v510 = vunpack.c.l.b16 %v215
      %v511 = vpack.c.b16 %v510, %v509
      %v514 = vsel %vm230, %v506, 0
      %516 = vmatprep.subr.bf16.mxu0 0
      %517 = vmatpush1.bf16.msra.mxu0 %v511
      %518 = vmatprep.subr.bf16.mxu0 0
      %519 = vmatpush1.bf16.msra.mxu0 0
      %520 = vmatprep.subr.bf16.mxu0 0
      %521 = vmatpush1.bf16.msra.mxu0 0
      %522 = vmatprep.subr.bf16.mxu0 0
      %523 = vmatpush1.bf16.msra.mxu0 0
      %524 = vmatprep.subr.bf16.mxu0 0
      %525 = vmatpush1.bf16.msra.mxu0 0
      %526 = vmatprep.subr.bf16.mxu0 0
      %527 = vmatpush1.bf16.msra.mxu0 0
      %528 = vmatprep.subr.bf16.mxu0 0
      %529 = vmatpush1.bf16.msra.mxu0 0
      %530 = vmatprep.subr.bf16.mxu0 0
      %531 = vmatpush1.bf16.msra.mxu0 0
      %532 = vmatprep.subr.bf16.mxu0 0
      %533 = vmatpush1.bf16.msra.mxu0 0
      %534 = vmatprep.subr.bf16.mxu0 0
      %535 = vmatpush1.bf16.msra.mxu0 0
      %536 = vmatprep.subr.bf16.mxu0 0
      %537 = vmatpush1.bf16.msra.mxu0 0
      %538 = vmatprep.subr.bf16.mxu0 0
      %539 = vmatpush1.bf16.msra.mxu0 0
      %540 = vmatprep.subr.bf16.mxu0 0
      %541 = vmatpush1.bf16.msra.mxu0 0
      %542 = vmatprep.subr.bf16.mxu0 0
      %543 = vmatpush1.bf16.msra.mxu0 0
      %544 = vmatprep.subr.bf16.mxu0 0
      %545 = vmatpush1.bf16.msra.mxu0 0
      %546 = vmatprep.subr.bf16.mxu0 0
      %547 = vmatpush1.bf16.msra.mxu0 0
      %548 = vmatprep.mubr.bf16.mxu0 0
      %549 = vmatmul.mubr.bf16.gmra.mrb[0].mxu0 %v514
      %v550 = vpop.f32.mrb[0].mxu0
      %v551 = vadd.f32 0.0, %v550
      %v552 = vpop.f32.mrb[0].mxu0
      %v553 = vpop.f32.mrb[0].mxu0
      %v554 = vpop.f32.mrb[0].mxu0
      %555 = vdwg.mxu0
      %v556 = vadd.f32 %v394, %v551
      %vm557 = vcmask 258048
      %558 = vst.msk [vmem:[%s209] sm:$0x1f] %vm557, %v556
      %p559 = scmp.lt.s32.totalorder %s15, 1
      %s560 = scalar_select %p559, %s15, 1
      %s561 = smul.addr %s560, 8
      %s562 = scalar_lea.vmem %s4, %s561
      // Predicated region
      $region37: #{clip_vision_classifier_forward.12} parent=35 // pred_check
        %p563 = pneg %p127
      $region38: #{clip_vision_classifier_forward.12} parent=35 // pred_check_branch
        %565 = sbr.rel (%p563) target = $region40
      $region39: #{clip_vision_classifier_forward.12} parent=35 // pred_region
        _
      $region40: #{clip_vision_classifier_forward.12} parent=35 // pred_fallthru
        _
    $region36: #{clip_vision_classifier_forward.12} parent=5 // pred_fallthru
      _
    %p566 = scmp.le.s32.totalorder 2, %s10
    // Predicated region
    $region41: #{clip_vision_classifier_forward.12} parent=5 // pred_check
      %p567 = pneg %p566
    $region42: #{clip_vision_classifier_forward.12} parent=5 // pred_check_branch
      %569 = sbr.rel (%p567) target = $region44
    $region43: #{clip_vision_classifier_forward.12} parent=5 // pred_region
      %s570 = ssub.s32 %s10, 2
      // Predicated region
      $region45: #{clip_vision_classifier_forward.12} parent=43 // pred_check
        %p571 = pneg %p133
      $region46: #{clip_vision_classifier_forward.12} parent=43 // pred_check_branch
        %573 = sbr.rel (%p571) target = $region48
      $region47: #{clip_vision_classifier_forward.12} parent=43 // pred_region
        %p574 = scmp.lt.s32.totalorder %s16, 1
        %s575 = scalar_select %p574, %s16, 1
        %s576 = smul.addr %s575, 8
        %s577 = scalar_lea.vmem %s4, %s576
      $region48: #{clip_vision_classifier_forward.12} parent=43 // pred_fallthru
        _
    $region44: #{clip_vision_classifier_forward.12} parent=5 // pred_fallthru
      _
  $region6: #{clip_vision_classifier_forward.12} parent=0 // loop_footer
    %s14 = sadd.s32 1, %s10
  $region7: #{clip_vision_classifier_forward.12} parent=0 // loop_footer_branch
    %9 = sbr.rel target = $region3
  $region8: #{clip_vision_classifier_forward.12} parent=0 // loop_exit
    _

// kernel: clip_vision_classifier_forward.13
$region0: #{clip_vision_classifier_forward.13}
  #allocation0 [shape = 'u32[]', space=smem, size = 0x4, offset = 0x4, fixed_abs, tag = 'smem constant byte address 0x4 - core index']
  #allocation1 [shape = 'u32[144,128]{1,0:T(1,128)}', space=vmem, size = 0x12000, scoped, tag = 'internal scratch']
  %s0 = inlined_call_operand.vmem [shape: f32[2,5,32], index: 0, kind: input, shape index: {}]
  %s1 = inlined_call_operand.vmem [shape: f32[1,32], index: 1, kind: input, shape index: {}]
  %s2 = inlined_call_operand.vmem [shape: f32[1,32], index: 2, kind: input, shape index: {}]
  %s3 = inlined_call_operand.vmem [shape: bf16[32,64], index: 3, kind: input, shape index: {}]
  %s4 = inlined_call_operand.vmem [shape: f32[1,64], index: 4, kind: input, shape index: {}]
  %s5 = inlined_call_operand.vmem [shape: bf16[64,32], index: 5, kind: input, shape index: {}]
  %s6 = inlined_call_operand.vmem [shape: f32[1,32], index: 6, kind: input, shape index: {}]
  %s7 = inlined_call_operand.vmem [shape: f32[2,5,32], index: 7, kind: output, shape index: {}]
  %s8 = sld [smem:[#allocation0]]
  $region61: #{clip_vision_classifier_forward.13} parent=0
    _
  %s10 = ssub.s32 1, %s8
  %s11 = scalar_select 0, %s10, %s8
  loop: start=0, step=1, limit=4
  $region2: #{clip_vision_classifier_forward.13} parent=0 // loop_pre_header
    _
  $region3: #{clip_vision_classifier_forward.13} parent=0 // loop_header
    %s13 = sphi 0, %s17
    %p14 = scmp.ge.s32.totalorder %s13, 4
    %s23 = sphi 0, %s25
    %s26 = sphi 0, %s23
    %s27 = sphi 0, %s26
    %s43 = sphi 0, %s27
    %s47 = sphi 0, %s47
    %s49 = sphi 0, %s47
    %s50 = sphi 0, %s49
    %s64 = sphi 0, %s50
    %s68 = sphi 0, %s68
    %s70 = sphi 0, %s68
    %s71 = sphi 0, %s70
    %s85 = sphi 0, %s71
    %s89 = sphi 0, %s89
    %s91 = sphi 0, %s89
    %s92 = sphi 0, %s91
    %s106 = sphi 0, %s92
    %s110 = sphi 0, %s110
    %s112 = sphi 0, %s110
    %s113 = sphi 0, %s112
    %s127 = sphi 0, %s113
    %s131 = sphi 0, %s131
    %s133 = sphi 0, %s131
    %s134 = sphi 0, %s133
    %s148 = sphi 0, %s134
    %s152 = sphi 0, %s152
    %s154 = sphi 0, %s152
    %s155 = sphi 0, %s154
    %s169 = sphi 0, %s155
    %s175 = sphi 0, %s177
    %s178 = sphi 0, %s175
    %s179 = sphi 0, %s178
    %s195 = sphi 0, %s179
  $region4: #{clip_vision_classifier_forward.13} parent=0 // loop_header_branch
    %16 = sbr.rel (%p14) target = $region8
  $region5: #{clip_vision_classifier_forward.13} parent=0 // loop_body
    %s18 = ssub.s32 %s13, 1
    %s19 = ssub.s32 %s13, 2
    %s20 = sadd.s32 %s13, 1
    %s21 = ssub.s32 %s13, %s20
    %p22 = scmp.eq.s32.totalorder %s21, 0
    %s24 = sadd.s32 %s23, 1
    %s25 = scalar_select %p22, %s23, %s24
    %p28 = pneg %p22
    %p29 = scmp.eq.s32.totalorder %s13, 1
    %p30 = por %p28, %p29
    %p31 = scmp.ne.s32.totalorder %s23, %s26
    %p32 = scmp.eq.s32.totalorder %s13, 0
    %p33 = por %p31, %p32
    %p34 = scmp.ne.s32.totalorder %s23, %s26
    %p35 = scmp.eq.s32.totalorder %s18, 1
    %p36 = por %p34, %p35
    %p37 = scmp.ne.s32.totalorder %s26, %s27
    %p38 = scmp.eq.s32.totalorder %s18, 0
    %p39 = por %p37, %p38
    %p40 = scmp.ne.s32.totalorder %s26, %s27
    %p41 = scmp.eq.s32.totalorder %s19, 1
    %p42 = por %p40, %p41
    %p44 = scmp.ne.s32.totalorder %s27, %s43
    %p45 = scmp.eq.s32.totalorder %s19, 0
    %p46 = por %p44, %p45
    %s48 = sadd.s32 %s47, 1
    %p51 = scmp.eq.s32.totalorder %s13, 1
    %p52 = scmp.ne.s32.totalorder %s47, %s49
    %p53 = scmp.eq.s32.totalorder %s13, 0
    %p54 = por %p52, %p53
    %p55 = scmp.ne.s32.totalorder %s47, %s49
    %p56 = scmp.eq.s32.totalorder %s18, 1
    %p57 = por %p55, %p56
    %p58 = scmp.ne.s32.totalorder %s49, %s50
    %p59 = scmp.eq.s32.totalorder %s18, 0
    %p60 = por %p58, %p59
    %p61 = scmp.ne.s32.totalorder %s49, %s50
    %p62 = scmp.eq.s32.totalorder %s19, 1
    %p63 = por %p61, %p62
    %p65 = scmp.ne.s32.totalorder %s50, %s64
    %p66 = scmp.eq.s32.totalorder %s19, 0
    %p67 = por %p65, %p66
    %s69 = sadd.s32 %s68, 1
    %p72 = scmp.eq.s32.totalorder %s13, 1
    %p73 = scmp.ne.s32.totalorder %s68, %s70
    %p74 = scmp.eq.s32.totalorder %s13, 0
    %p75 = por %p73, %p74
    %p76 = scmp.ne.s32.totalorder %s68, %s70
    %p77 = scmp.eq.s32.totalorder %s18, 1
    %p78 = por %p76, %p77
    %p79 = scmp.ne.s32.totalorder %s70, %s71
    %p80 = scmp.eq.s32.totalorder %s18, 0
    %p81 = por %p79, %p80
    %p82 = scmp.ne.s32.totalorder %s70, %s71
    %p83 = scmp.eq.s32.totalorder %s19, 1
    %p84 = por %p82, %p83
    %p86 = scmp.ne.s32.totalorder %s71, %s85
    %p87 = scmp.eq.s32.totalorder %s19, 0
    %p88 = por %p86, %p87
    %s90 = sadd.s32 %s89, 1
    %p93 = scmp.eq.s32.totalorder %s13, 1
    %p94 = scmp.ne.s32.totalorder %s89, %s91
    %p95 = scmp.eq.s32.totalorder %s13, 0
    %p96 = por %p94, %p95
    %p97 = scmp.ne.s32.totalorder %s89, %s91
    %p98 = scmp.eq.s32.totalorder %s18, 1
    %p99 = por %p97, %p98
    %p100 = scmp.ne.s32.totalorder %s91, %s92
    %p101 = scmp.eq.s32.totalorder %s18, 0
    %p102 = por %p100, %p101
    %p103 = scmp.ne.s32.totalorder %s91, %s92
    %p104 = scmp.eq.s32.totalorder %s19, 1
    %p105 = por %p103, %p104
    %p107 = scmp.ne.s32.totalorder %s92, %s106
    %p108 = scmp.eq.s32.totalorder %s19, 0
    %p109 = por %p107, %p108
    %s111 = sadd.s32 %s110, 1
    %p114 = scmp.eq.s32.totalorder %s13, 1
    %p115 = scmp.ne.s32.totalorder %s110, %s112
    %p116 = scmp.eq.s32.totalorder %s13, 0
    %p117 = por %p115, %p116
    %p118 = scmp.ne.s32.totalorder %s110, %s112
    %p119 = scmp.eq.s32.totalorder %s18, 1
    %p120 = por %p118, %p119
    %p121 = scmp.ne.s32.totalorder %s112, %s113
    %p122 = scmp.eq.s32.totalorder %s18, 0
    %p123 = por %p121, %p122
    %p124 = scmp.ne.s32.totalorder %s112, %s113
    %p125 = scmp.eq.s32.totalorder %s19, 1
    %p126 = por %p124, %p125
    %p128 = scmp.ne.s32.totalorder %s113, %s127
    %p129 = scmp.eq.s32.totalorder %s19, 0
    %p130 = por %p128, %p129
    %s132 = sadd.s32 %s131, 1
    %p135 = scmp.eq.s32.totalorder %s13, 1
    %p136 = scmp.ne.s32.totalorder %s131, %s133
    %p137 = scmp.eq.s32.totalorder %s13, 0
    %p138 = por %p136, %p137
    %p139 = scmp.ne.s32.totalorder %s131, %s133
    %p140 = scmp.eq.s32.totalorder %s18, 1
    %p141 = por %p139, %p140
    %p142 = scmp.ne.s32.totalorder %s133, %s134
    %p143 = scmp.eq.s32.totalorder %s18, 0
    %p144 = por %p142, %p143
    %p145 = scmp.ne.s32.totalorder %s133, %s134
    %p146 = scmp.eq.s32.totalorder %s19, 1
    %p147 = por %p145, %p146
    %p149 = scmp.ne.s32.totalorder %s134, %s148
    %p150 = scmp.eq.s32.totalorder %s19, 0
    %p151 = por %p149, %p150
    %s153 = sadd.s32 %s152, 1
    %p156 = scmp.eq.s32.totalorder %s13, 1
    %p157 = scmp.ne.s32.totalorder %s152, %s154
    %p158 = scmp.eq.s32.totalorder %s13, 0
    %p159 = por %p157, %p158
    %p160 = scmp.ne.s32.totalorder %s152, %s154
    %p161 = scmp.eq.s32.totalorder %s18, 1
    %p162 = por %p160, %p161
    %p163 = scmp.ne.s32.totalorder %s154, %s155
    %p164 = scmp.eq.s32.totalorder %s18, 0
    %p165 = por %p163, %p164
    %p166 = scmp.ne.s32.totalorder %s154, %s155
    %p167 = scmp.eq.s32.totalorder %s19, 1
    %p168 = por %p166, %p167
    %p170 = scmp.ne.s32.totalorder %s155, %s169
    %p171 = scmp.eq.s32.totalorder %s19, 0
    %p172 = por %p170, %p171
    %s173 = ssub.s32 %s13, %s20
    %p174 = scmp.eq.s32.totalorder %s173, 0
    %s176 = sadd.s32 %s175, 1
    %s177 = scalar_select %p174, %s175, %s176
    %p180 = pneg %p174
    %p181 = scmp.eq.s32.totalorder %s13, 1
    %p182 = por %p180, %p181
    %p183 = scmp.ne.s32.totalorder %s175, %s178
    %p184 = scmp.eq.s32.totalorder %s13, 0
    %p185 = por %p183, %p184
    %p186 = scmp.ne.s32.totalorder %s175, %s178
    %p187 = scmp.eq.s32.totalorder %s18, 1
    %p188 = por %p186, %p187
    %p189 = scmp.ne.s32.totalorder %s178, %s179
    %p190 = scmp.eq.s32.totalorder %s18, 0
    %p191 = por %p189, %p190
    %p192 = scmp.ne.s32.totalorder %s178, %s179
    %p193 = scmp.eq.s32.totalorder %s19, 1
    %p194 = por %p192, %p193
    %p196 = scmp.ne.s32.totalorder %s179, %s195
    %p197 = scmp.eq.s32.totalorder %s19, 0
    %p198 = por %p196, %p197
    %p199 = scmp.le.s32.totalorder 1, %s13
    %p200 = scmp.lt.s32.totalorder %s13, 3
    %p201 = pnand %p199, %p200
    %p202 = pneg %p201
    // Predicated region
    $region9: #{clip_vision_classifier_forward.13} parent=5 // pred_check
      _
    $region10: #{clip_vision_classifier_forward.13} parent=5 // pred_check_branch
      %204 = sbr.rel (%p201) target = $region12
    $region11: #{clip_vision_classifier_forward.13} parent=5 // pred_region
      %s205 = ssub.s32 %s13, 1
      // Predicated region
      $region13: #{clip_vision_classifier_forward.13} parent=11 // pred_check
        %p206 = pneg %p60
      $region14: #{clip_vision_classifier_forward.13} parent=11 // pred_check_branch
        %208 = sbr.rel (%p206) target = $region16
      $region15: #{clip_vision_classifier_forward.13} parent=11 // pred_region
        _
      $region16: #{clip_vision_classifier_forward.13} parent=11 // pred_fallthru
        _
      // Predicated region
      $region17: #{clip_vision_classifier_forward.13} parent=11 // pred_check
        %p209 = pneg %p81
      $region18: #{clip_vision_classifier_forward.13} parent=11 // pred_check_branch
        %211 = sbr.rel (%p209) target = $region20
      $region19: #{clip_vision_classifier_forward.13} parent=11 // pred_region
        _
      $region20: #{clip_vision_classifier_forward.13} parent=11 // pred_fallthru
        _
      // Predicated region
      $region21: #{clip_vision_classifier_forward.13} parent=11 // pred_check
        %p212 = pneg %p102
      $region22: #{clip_vision_classifier_forward.13} parent=11 // pred_check_branch
        %214 = sbr.rel (%p212) target = $region24
      $region23: #{clip_vision_classifier_forward.13} parent=11 // pred_region
        _
      $region24: #{clip_vision_classifier_forward.13} parent=11 // pred_fallthru
        _
      // Predicated region
      $region25: #{clip_vision_classifier_forward.13} parent=11 // pred_check
        %p215 = pneg %p123
      $region26: #{clip_vision_classifier_forward.13} parent=11 // pred_check_branch
        %217 = sbr.rel (%p215) target = $region28
      $region27: #{clip_vision_classifier_forward.13} parent=11 // pred_region
        _
      $region28: #{clip_vision_classifier_forward.13} parent=11 // pred_fallthru
        _
      // Predicated region
      $region29: #{clip_vision_classifier_forward.13} parent=11 // pred_check
        %p218 = pneg %p144
      $region30: #{clip_vision_classifier_forward.13} parent=11 // pred_check_branch
        %220 = sbr.rel (%p218) target = $region32
      $region31: #{clip_vision_classifier_forward.13} parent=11 // pred_region
        _
      $region32: #{clip_vision_classifier_forward.13} parent=11 // pred_fallthru
        _
      // Predicated region
      $region33: #{clip_vision_classifier_forward.13} parent=11 // pred_check
        %p221 = pneg %p165
      $region34: #{clip_vision_classifier_forward.13} parent=11 // pred_check_branch
        %223 = sbr.rel (%p221) target = $region36
      $region35: #{clip_vision_classifier_forward.13} parent=11 // pred_region
        _
      $region36: #{clip_vision_classifier_forward.13} parent=11 // pred_fallthru
        _
    $region12: #{clip_vision_classifier_forward.13} parent=5 // pred_fallthru
      _
    %p224 = scmp.lt.s32.totalorder %s13, 2
    // Predicated region
    $region37: #{clip_vision_classifier_forward.13} parent=5 // pred_check
      %p225 = pneg %p224
    $region38: #{clip_vision_classifier_forward.13} parent=5 // pred_check_branch
      %227 = sbr.rel (%p225) target = $region40
    $region39: #{clip_vision_classifier_forward.13} parent=5 // pred_region
      // Predicated region
      $region41: #{clip_vision_classifier_forward.13} parent=39 // pred_check
        %p228 = pneg %p33
      $region42: #{clip_vision_classifier_forward.13} parent=39 // pred_check_branch
        %230 = sbr.rel (%p228) target = $region44
      $region43: #{clip_vision_classifier_forward.13} parent=39 // pred_region
        %p231 = scmp.lt.s32.totalorder %s13, 1
        %s232 = scalar_select %p231, %s13, 1
        %s233 = smul.addr %s232, 8
        %s234 = scalar_lea.vmem %s0, %s233
      $region44: #{clip_vision_classifier_forward.13} parent=39 // pred_fallthru
        _
    $region40: #{clip_vision_classifier_forward.13} parent=5 // pred_fallthru
      _
    %p235 = scmp.le.s32.totalorder 1, %s13
    %p236 = scmp.lt.s32.totalorder %s13, 3
    %p237 = pnand %p235, %p236
    %p238 = pneg %p237
    // Predicated region
    $region45: #{clip_vision_classifier_forward.13} parent=5 // pred_check
      _
    $region46: #{clip_vision_classifier_forward.13} parent=5 // pred_check_branch
      %240 = sbr.rel (%p237) target = $region48
    $region47: #{clip_vision_classifier_forward.13} parent=5 // pred_region
      %s241 = ssub.s32 %s13, 1
      %p242 = scmp.lt.s32.totalorder %s18, 1
      %s243 = scalar_select %p242, %s18, 1
      %s244 = smul.addr %s243, 8
      %s245 = scalar_lea.vmem %s0, %s244
      %p246 = pneg %p39
      %p247 = pneg %p36
      %p248 = pneg %p60
      %p249 = pneg %p57
      %p250 = pneg %p81
      %p251 = pneg %p78
      %p252 = pneg %p102
      %p253 = pneg %p99
      %p254 = pneg %p123
      %p255 = pneg %p120
      %p256 = pneg %p144
      %p257 = pneg %p141
      %p258 = pneg %p165
      %p259 = pneg %p162
      %p260 = pneg %p191
      %p261 = pneg %p188
      %p262 = scmp.lt.s32.totalorder %s18, 1
      %s263 = scalar_select %p262, %s18, 1
      %s264 = smul.addr %s263, 8
      %s265 = scalar_lea.vmem %s7, %s264
      %p266 = scmp.lt.s32.totalorder %s18, 1
      %s267 = scalar_select %p266, %s18, 1
      %s268 = smul.addr %s267, 8
      %s269 = scalar_lea.vmem %s0, %s268
      %p270 = scmp.lt.s32.totalorder %s18, 1
      %s271 = scalar_select %p270, %s18, 1
      %s272 = smul.addr %s271, 8
      %s273 = scalar_lea.vmem %s7, %s272
      %v275 = vld [vmem:[%s269] sm:$0x1f]
      %v276 = vld [vmem:[%s1] sm:$0x1]
      %v277 = vld [vmem:[%s2] sm:$0x1]
      %vm278 = vcmask 258048
      %v279 = vsel %vm278, %v275, 0.0
      %280 = vadd.xlane.f32.xlu0 %v279
      %v281 = vpop.xlane.xlu0 %280
      %v282 = vrcp.pop 32.0
      %v283 = vmul.f32 %v281, %v282
      %v284 = vsub.f32 %v275, %v283
      %v285 = vmul.f32 %v284, %v284
      %v286 = vsel %vm278, %v285, 0.0
      %287 = vadd.xlane.f32.xlu0 %v286
      %v288 = vpop.xlane.xlu0 %287
      %v289 = vmul.f32 %v288, %v282
      %v290 = vadd.f32 %v289, 1e-05
      %v291 = vrsqrt.pop %v290
      %v292 = vmul.f32 %v284, %v291
      %v294 = vlaneseq
      %v295 = vshrl.u32 %v294, 7
      %v296 = vsub.s32 0, %v295
      %v297 = vrot.slane %v276, %v296
      %v299 = vmul.f32 %v292, %v297
      %v301 = vlaneseq
      %v302 = vshrl.u32 %v301, 7
      %v303 = vsub.s32 0, %v302
      %v304 = vrot.slane %v277, %v303
      %v306 = vadd.f32 %v299, %v304
      %v307 = vpack.c.bf16 %v306, %v306
      %v308 = vld [vmem:[%s3] sm:$0xf]
      %v309 = vld [vmem:[%s3 + $0x4] sm:$0xf]
      %v310 = vld [vmem:[%s3 + $0x8] sm:$0xf]
      %v311 = vld [vmem:[%s3 + $0xc] sm:$0xf]
      %v312 = vld [vmem:[%s4] sm:$0x1]
      %v314 = vlaneseq
      %v315 = vshrl.u32 %v314, 7
      %v316 = vsub.s32 0, %v315
      %v317 = vrot.slane %v312, %v316
      %v323 = vunpack.c.l.b16 %v308
      %v324 = vunpack.c.l.b16 %v309
      %v325 = vunpack.c.l.b16 %v310
      %v326 = vunpack.c.l.b16 %v311
      %v327 = vpack.c.b16 %v324, %v323
      %v328 = vpack.c.b16 %v326, %v325
      %vm331 = vcmask 261120
      %v333 = vsel %vm331, %v307, 0
      %335 = vmatprep.subr.bf16.mxu0 0
      %336 = vmatpush1.bf16.msra.mxu0 %v327
      %337 = vmatprep.subr.bf16.mxu0 0
      %338 = vmatpush1.bf16.msra.mxu0 %v328
      %339 = vmatprep.subr.bf16.mxu0 0
      %340 = vmatpush1.bf16.msra.mxu0 0
      %341 = vmatprep.subr.bf16.mxu0 0
      %342 = vmatpush1.bf16.msra.mxu0 0
      %343 = vmatprep.subr.bf16.mxu0 0
      %344 = vmatpush1.bf16.msra.mxu0 0
      %345 = vmatprep.subr.bf16.mxu0 0
      %346 = vmatpush1.bf16.msra.mxu0 0
      %347 = vmatprep.subr.bf16.mxu0 0
      %348 = vmatpush1.bf16.msra.mxu0 0
      %349 = vmatprep.subr.bf16.mxu0 0
      %350 = vmatpush1.bf16.msra.mxu0 0
      %351 = vmatprep.subr.bf16.mxu0 0
      %352 = vmatpush1.bf16.msra.mxu0 0
      %353 = vmatprep.subr.bf16.mxu0 0
      %354 = vmatpush1.bf16.msra.mxu0 0
      %355 = vmatprep.subr.bf16.mxu0 0
      %356 = vmatpush1.bf16.msra.mxu0 0
      %357 = vmatprep.subr.bf16.mxu0 0
      %358 = vmatpush1.bf16.msra.mxu0 0
      %359 = vmatprep.subr.bf16.mxu0 0
      %360 = vmatpush1.bf16.msra.mxu0 0
      %361 = vmatprep.subr.bf16.mxu0 0
      %362 = vmatpush1.bf16.msra.mxu0 0
      %363 = vmatprep.subr.bf16.mxu0 0
      %364 = vmatpush1.bf16.msra.mxu0 0
      %365 = vmatprep.subr.bf16.mxu0 0
      %366 = vmatpush1.bf16.msra.mxu0 0
      %367 = vmatprep.mubr.bf16.mxu0 0
      %368 = vmatmul.mubr.bf16.gmra.mrb[0].mxu0 %v333
      %v369 = vpop.f32.mrb[0].mxu0
      %v370 = vadd.f32 %v317, %v369
      %v371 = vpop.f32.mrb[0].mxu0
      %v372 = vpop.f32.mrb[0].mxu0
      %v373 = vpop.f32.mrb[0].mxu0
      %374 = vdwg.mxu0
      %v375 = vmul.f32 %v370, 1.702
      %v376 = vxor.u32 %v375, 2147483648
      %v377 = vmul.f32 %v376, 1.442695
      %v378 = vpow.pop %v377
      %v379 = vadd.f32 %v378, 1.0
      %v380 = vrcp.pop %v379
      %v381 = vmul.f32 1.0, %v380
      %v382 = vmul.f32 %v370, %v381
      %v383 = vpack.c.bf16 %v382, %v382
      %v384 = vld [vmem:[%s5] sm:$0xf]
      %v385 = vld [vmem:[%s5 + $0x4] sm:$0xf]
      %v386 = vld [vmem:[%s5 + $0x8] sm:$0xf]
      %v387 = vld [vmem:[%s5 + $0xc] sm:$0xf]
      %v388 = vld [vmem:[%s5 + $0x10] sm:$0xf]
      %v389 = vld [vmem:[%s5 + $0x14] sm:$0xf]
      %v390 = vld [vmem:[%s5 + $0x18] sm:$0xf]
      %v391 = vld [vmem:[%s5 + $0x1c] sm:$0xf]
      %v392 = vld [vmem:[%s6] sm:$0x1]
      %v394 = vlaneseq
      %v395 = vshrl.u32 %v394, 7
      %v396 = vsub.s32 0, %v395
      %v397 = vrot.slane %v392, %v396
      %v407 = vunpack.c.l.b16 %v384
      %v408 = vunpack.c.l.b16 %v385
      %v409 = vunpack.c.l.b16 %v386
      %v410 = vunpack.c.l.b16 %v387
      %v411 = vunpack.c.l.b16 %v388
      %v412 = vunpack.c.l.b16 %v389
      %v413 = vunpack.c.l.b16 %v390
      %v414 = vunpack.c.l.b16 %v391
      %v415 = vpack.c.b16 %v408, %v407
      %v416 = vpack.c.b16 %v410, %v409
      %v417 = vpack.c.b16 %v412, %v411
      %v418 = vpack.c.b16 %v414, %v413
      %vm423 = vcmask 523264
      %v425 = vsel %vm423, %v383, 0
      %427 = vmatprep.subr.bf16.mxu0 0
      %428 = vmatpush1.bf16.msra.mxu0 %v415
      %429 = vmatprep.subr.bf16.mxu0 0
      %430 = vmatpush1.bf16.msra.mxu0 %v416
      %431 = vmatprep.subr.bf16.mxu0 0
      %432 = vmatpush1.bf16.msra.mxu0 %v417
      %433 = vmatprep.subr.bf16.mxu0 0
      %434 = vmatpush1.bf16.msra.mxu0 %v418
      %435 = vmatprep.subr.bf16.mxu0 0
      %436 = vmatpush1.bf16.msra.mxu0 0
      %437 = vmatprep.subr.bf16.mxu0 0
      %438 = vmatpush1.bf16.msra.mxu0 0
      %439 = vmatprep.subr.bf16.mxu0 0
      %440 = vmatpush1.bf16.msra.mxu0 0
      %441 = vmatprep.subr.bf16.mxu0 0
      %442 = vmatpush1.bf16.msra.mxu0 0
      %443 = vmatprep.subr.bf16.mxu0 0
      %444 = vmatpush1.bf16.msra.mxu0 0
      %445 = vmatprep.subr.bf16.mxu0 0
      %446 = vmatpush1.bf16.msra.mxu0 0
      %447 = vmatprep.subr.bf16.mxu0 0
      %448 = vmatpush1.bf16.msra.mxu0 0
      %449 = vmatprep.subr.bf16.mxu0 0
      %450 = vmatpush1.bf16.msra.mxu0 0
      %451 = vmatprep.subr.bf16.mxu0 0
      %452 = vmatpush1.bf16.msra.mxu0 0
      %453 = vmatprep.subr.bf16.mxu0 0
      %454 = vmatpush1.bf16.msra.mxu0 0
      %455 = vmatprep.subr.bf16.mxu0 0
      %456 = vmatpush1.bf16.msra.mxu0 0
      %457 = vmatprep.subr.bf16.mxu0 0
      %458 = vmatpush1.bf16.msra.mxu0 0
      %459 = vmatprep.mubr.bf16.mxu0 0
      %460 = vmatmul.mubr.bf16.gmra.mrb[0].mxu0 %v425
      %v461 = vpop.f32.mrb[0].mxu0
      %v462 = vadd.f32 %v397, %v461
      %v463 = vpop.f32.mrb[0].mxu0
      %v464 = vpop.f32.mrb[0].mxu0
      %v465 = vpop.f32.mrb[0].mxu0
      %466 = vdwg.mxu0
      %v467 = vadd.f32 %v275, %v462
      %468 = vst.msk [vmem:[%s273] sm:$0x1f] %vm278, %v467
      %p469 = scmp.lt.s32.totalorder %s18, 1
      %s470 = scalar_select %p469, %s18, 1
      %s471 = smul.addr %s470, 8
      %s472 = scalar_lea.vmem %s7, %s471
      // Predicated region
      $region49: #{clip_vision_classifier_forward.13} parent=47 // pred_check
        %p473 = pneg %p188
      $region50: #{clip_vision_classifier_forward.13} parent=47 // pred_check_branch
        %475 = sbr.rel (%p473) target = $region52
      $region51: #{clip_vision_classifier_forward.13} parent=47 // pred_region
        _
      $region52: #{clip_vision_classifier_forward.13} parent=47 // pred_fallthru
        _
    $region48: #{clip_vision_classifier_forward.13} parent=5 // pred_fallthru
      _
    %p476 = scmp.le.s32.totalorder 2, %s13
    // Predicated region
    $region53: #{clip_vision_classifier_forward.13} parent=5 // pred_check
      %p477 = pneg %p476
    $region54: #{clip_vision_classifier_forward.13} parent=5 // pred_check_branch
      %479 = sbr.rel (%p477) target = $region56
    $region55: #{clip_vision_classifier_forward.13} parent=5 // pred_region
      %s480 = ssub.s32 %s13, 2
      // Predicated region
      $region57: #{clip_vision_classifier_forward.13} parent=55 // pred_check
        %p481 = pneg %p194
      $region58: #{clip_vision_classifier_forward.13} parent=55 // pred_check_branch
        %483 = sbr.rel (%p481) target = $region60
      $region59: #{clip_vision_classifier_forward.13} parent=55 // pred_region
        %p484 = scmp.lt.s32.totalorder %s19, 1
        %s485 = scalar_select %p484, %s19, 1
        %s486 = smul.addr %s485, 8
        %s487 = scalar_lea.vmem %s7, %s486
      $region60: #{clip_vision_classifier_forward.13} parent=55 // pred_fallthru
        _
    $region56: #{clip_vision_classifier_forward.13} parent=5 // pred_fallthru
      _
  $region6: #{clip_vision_classifier_forward.13} parent=0 // loop_footer
    %s17 = sadd.s32 1, %s13
  $region7: #{clip_vision_classifier_forward.13} parent=0 // loop_footer_branch
    %12 = sbr.rel target = $region3
  $region8: #{clip_vision_classifier_forward.13} parent=0 // loop_exit
    _

// kernel: clip_vision_classifier_forward.17
$region0: #{clip_vision_classifier_forward.17}
  #allocation0 [shape = 'u32[]', space=smem, size = 0x4, offset = 0x4, fixed_abs, tag = 'smem constant byte address 0x4 - core index']
  #allocation1 [shape = 'u32[144,128]{1,0:T(1,128)}', space=vmem, size = 0x12000, scoped, tag = 'internal scratch']
  %s0 = inlined_call_operand.vmem [shape: f32[2,32], index: 0, kind: input, shape index: {}]
  %s1 = inlined_call_operand.vmem [shape: f32[1,32], index: 1, kind: input, shape index: {}]
  %s2 = inlined_call_operand.vmem [shape: f32[1,32], index: 2, kind: input, shape index: {}]
  %s3 = inlined_call_operand.vmem [shape: bf16[32,128], index: 3, kind: input, shape index: {}]
  %s4 = inlined_call_operand.vmem [shape: f32[1,128], index: 4, kind: input, shape index: {}]
  %s5 = inlined_call_operand.hbm [shape: f32[2,128], index: 5, kind: output, shape index: {}]
  %s6 = sld [smem:[#allocation0]]
  $region30: #{clip_vision_classifier_forward.17} parent=0
    _
  %s8 = ssub.s32 1, %s6
  %s9 = scalar_select 0, %s8, %s6
  $region1: #{clip_vision_classifier_forward.17} parent=0
    #allocation2 [shape = 'u8[1024]{0}', space=vmem, size = 0x400, scoped, tag = 'output window, operand 0, single buffered']
    #allocation3 [shape = 's32[1]{0}', space=sflag, size = 0x4, scoped, tag = 'scoped memory for clip_vision_classifier_forward.17']
    %10 = vsyncpa [#allocation3], 0
    // Predicated region
    $region2: #{clip_vision_classifier_forward.17} parent=1 // pred_check
      _
    $region3: #{clip_vision_classifier_forward.17} parent=1 // pred_check_branch
      %12 = sbr.rel (0) target = $region5
    $region4: #{clip_vision_classifier_forward.17} parent=1 // pred_region
      _
    $region5: #{clip_vision_classifier_forward.17} parent=1 // pred_fallthru
      _
    // Predicated region
    $region6: #{clip_vision_classifier_forward.17} parent=1 // pred_check
      _
    $region7: #{clip_vision_classifier_forward.17} parent=1 // pred_check_branch
      %14 = sbr.rel (0) target = $region9
    $region8: #{clip_vision_classifier_forward.17} parent=1 // pred_region
      _
    $region9: #{clip_vision_classifier_forward.17} parent=1 // pred_fallthru
      _
    // Predicated region
    $region10: #{clip_vision_classifier_forward.17} parent=1 // pred_check
      _
    $region11: #{clip_vision_classifier_forward.17} parent=1 // pred_check_branch
      %16 = sbr.rel (0) target = $region13
    $region12: #{clip_vision_classifier_forward.17} parent=1 // pred_region
      _
    $region13: #{clip_vision_classifier_forward.17} parent=1 // pred_fallthru
      _
    // Predicated region
    $region14: #{clip_vision_classifier_forward.17} parent=1 // pred_check
      _
    $region15: #{clip_vision_classifier_forward.17} parent=1 // pred_check_branch
      %18 = sbr.rel (0) target = $region17
    $region16: #{clip_vision_classifier_forward.17} parent=1 // pred_region
      _
    $region17: #{clip_vision_classifier_forward.17} parent=1 // pred_fallthru
      _
    // Predicated region
    $region18: #{clip_vision_classifier_forward.17} parent=1 // pred_check
      _
    $region19: #{clip_vision_classifier_forward.17} parent=1 // pred_check_branch
      %20 = sbr.rel (0) target = $region21
    $region20: #{clip_vision_classifier_forward.17} parent=1 // pred_region
      _
    $region21: #{clip_vision_classifier_forward.17} parent=1 // pred_fallthru
      _
    %v22 = vld [vmem:[%s0] sm:$0x3]
    %v23 = vld [vmem:[%s1] sm:$0x1]
    %v24 = vld [vmem:[%s2] sm:$0x1]
    %vm25 = vcmask 254976
    %v26 = vsel %vm25, %v22, 0.0
    %27 = vadd.xlane.f32.xlu0 %v26
    %v28 = vpop.xlane.xlu0 %27
    %v29 = vrcp.pop 32.0
    %v30 = vmul.f32 %v28, %v29
    %v31 = vsub.f32 %v22, %v30
    %v32 = vmul.f32 %v31, %v31
    %v33 = vsel %vm25, %v32, 0.0
    %34 = vadd.xlane.f32.xlu0 %v33
    %v35 = vpop.xlane.xlu0 %34
    %v36 = vmul.f32 %v35, %v29
    %v37 = vadd.f32 %v36, 1e-05
    %v38 = vrsqrt.pop %v37
    %v39 = vmul.f32 %v31, %v38
    %v41 = vlaneseq
    %v42 = vshrl.u32 %v41, 7
    %v43 = vsub.s32 0, %v42
    %v44 = vrot.slane %v23, %v43
    %v46 = vmul.f32 %v39, %v44
    %v48 = vlaneseq
    %v49 = vshrl.u32 %v48, 7
    %v50 = vsub.s32 0, %v49
    %v51 = vrot.slane %v24, %v50
    %v53 = vadd.f32 %v46, %v51
    %v54 = vpack.c.bf16 %v53, %v53
    %v55 = vld [vmem:[%s3] sm:$0xf]
    %v56 = vld [vmem:[%s3 + $0x4] sm:$0xf]
    %v57 = vld [vmem:[%s3 + $0x8] sm:$0xf]
    %v58 = vld [vmem:[%s3 + $0xc] sm:$0xf]
    %v59 = vld [vmem:[%s4] sm:$0x1]
    %v61 = vlaneseq
    %v62 = vshrl.u32 %v61, 7
    %v63 = vsub.s32 0, %v62
    %v64 = vrot.slane %v59, %v63
    %v70 = vunpack.c.l.b16 %v55
    %v71 = vunpack.c.l.b16 %v56
    %v72 = vunpack.c.l.b16 %v57
    %v73 = vunpack.c.l.b16 %v58
    %v74 = vpack.c.b16 %v71, %v70
    %v75 = vpack.c.b16 %v73, %v72
    %vm78 = vcmask 261120
    %v80 = vsel %vm78, %v54, 0
    %82 = vmatprep.subr.bf16.mxu0 0
    %83 = vmatpush1.bf16.msra.mxu0 %v74
    %84 = vmatprep.subr.bf16.mxu0 0
    %85 = vmatpush1.bf16.msra.mxu0 %v75
    %86 = vmatprep.subr.bf16.mxu0 0
    %87 = vmatpush1.bf16.msra.mxu0 0
    %88 = vmatprep.subr.bf16.mxu0 0
    %89 = vmatpush1.bf16.msra.mxu0 0
    %90 = vmatprep.subr.bf16.mxu0 0
    %91 = vmatpush1.bf16.msra.mxu0 0
    %92 = vmatprep.subr.bf16.mxu0 0
    %93 = vmatpush1.bf16.msra.mxu0 0
    %94 = vmatprep.subr.bf16.mxu0 0
    %95 = vmatpush1.bf16.msra.mxu0 0
    %96 = vmatprep.subr.bf16.mxu0 0
    %97 = vmatpush1.bf16.msra.mxu0 0
    %98 = vmatprep.subr.bf16.mxu0 0
    %99 = vmatpush1.bf16.msra.mxu0 0
    %100 = vmatprep.subr.bf16.mxu0 0
    %101 = vmatpush1.bf16.msra.mxu0 0
    %102 = vmatprep.subr.bf16.mxu0 0
    %103 = vmatpush1.bf16.msra.mxu0 0
    %104 = vmatprep.subr.bf16.mxu0 0
    %105 = vmatpush1.bf16.msra.mxu0 0
    %106 = vmatprep.subr.bf16.mxu0 0
    %107 = vmatpush1.bf16.msra.mxu0 0
    %108 = vmatprep.subr.bf16.mxu0 0
    %109 = vmatpush1.bf16.msra.mxu0 0
    %110 = vmatprep.subr.bf16.mxu0 0
    %111 = vmatpush1.bf16.msra.mxu0 0
    %112 = vmatprep.subr.bf16.mxu0 0
    %113 = vmatpush1.bf16.msra.mxu0 0
    %114 = vmatprep.mubr.bf16.mxu0 0
    %115 = vmatmul.mubr.bf16.gmra.mrb[0].mxu0 %v80
    %v116 = vpop.f32.mrb[0].mxu0
    %v117 = vadd.f32 %v64, %v116
    %v118 = vpop.f32.mrb[0].mxu0
    %v119 = vpop.f32.mrb[0].mxu0
    %v120 = vpop.f32.mrb[0].mxu0
    %121 = vdwg.mxu0
    %122 = vst [vmem:[#allocation2] sm:$0x3] %v117
    // Predicated region
    $region22: #{clip_vision_classifier_forward.17} parent=1 // pred_check
      _
    $region23: #{clip_vision_classifier_forward.17} parent=1 // pred_check_branch
      %124 = sbr.rel (0) target = $region25
    $region24: #{clip_vision_classifier_forward.17} parent=1 // pred_region
      %s126 = ssub.s32 32, 32
      %127 = vsyncadd [#allocation3], %s126
      %s129 = sshll.u32 [#allocation2], 4
      %s130 = int_to_ptr.vmem [resolvable:$true] %s129
      %132 = dma.vmem_to_hbm [thread:$0]  %s130, 32, %s5, [#allocation3]
    $region25: #{clip_vision_classifier_forward.17} parent=1 // pred_fallthru
      _
    // Predicated region
    $region26: #{clip_vision_classifier_forward.17} parent=1 // pred_check
      _
    $region27: #{clip_vision_classifier_forward.17} parent=1 // pred_check_branch
      %134 = sbr.rel (0) target = $region29
    $region28: #{clip_vision_classifier_forward.17} parent=1 // pred_region
      %135 = dma.done [#allocation3], 32
    $region29: #{clip_vision_classifier_forward.17} parent=1 // pred_fallthru
      _
    %136 = vsyncpa [#allocation3], 1

</llo_original>
